<compile_context>
chip_gen: v6e
topology: v6e:2x2x1
jax: 0.10.0
libtpu: 0.0.40
codegen_flags: <defaults>
</compile_context>

<pallas_src>
import functools

import jax
import jax.numpy as jnp
from jax.experimental import pallas as pl
from jax.experimental.pallas import tpu as pltpu


IN_FEATURES = 12000
HIDDEN = 512
TK = 3072  # K tile; 12000 pads to 12288 = 4 * 3072 (lane-aligned)


def _mlp_kernel(x_ref, w1_ref, b1_ref, w2_ref, o_ref, acc_ref):
    """grid = (hidden-half h, K-tile k).

    Accumulates x @ W1[:, h-half] over k in an f32 VMEM scratch; on the last k
    step applies bias + ReLU and the tiny second matmul with W2[h-half, :],
    writing a per-half partial output.  The two halves (and b2) are summed in
    the wrapper.
    """
    k = pl.program_id(1)

    @pl.when(k == 0)
    def _():
        acc_ref[...] = jnp.zeros_like(acc_ref)

    # bf16 x bf16 -> f32 accumulate on the MXU.
    acc_ref[...] += jnp.dot(
        x_ref[...], w1_ref[...], preferred_element_type=jnp.float32
    )

    @pl.when(k == pl.num_programs(1) - 1)
    def _():
        h = jnp.maximum(acc_ref[...] + b1_ref[...], 0.0)  # ReLU(x @ W1h + b1h)
        o_ref[0] = jnp.dot(
            h, w2_ref[...], preferred_element_type=jnp.float32
        ).astype(o_ref.dtype)


def prepare_params(w1, b1, w2, b2, tk=TK):
    """One-time parameter prep (hoisted out of the forward pass).

    Pads W1's reduction axis to a multiple of `tk` and stores it as bf16.
    b1 / W2 / b2 are tiny and stay f32.
    """
    K, _ = w1.shape
    K_pad = pl.cdiv(K, tk) * tk
    if K_pad != K:
        w1 = jnp.pad(w1, ((0, K_pad - K), (0, 0)))
    return (
        w1.astype(jnp.bfloat16),
        b1.astype(jnp.float32),
        w2.astype(jnp.float32),
        b2.astype(jnp.float32),
    )


@functools.partial(jax.jit, static_argnames=("tk",))
def mlp_forward(d_obs, w1_pad, b1, w2, b2, *, tk=TK):
    """Linear(12000,512) -> ReLU -> Linear(512,out) in one Pallas kernel.

    d_obs:  (B, 12000) f32 (B is kept as a full block, so any B works).
    w1_pad: (K_pad, 512) bf16 (pre-padded by `prepare_params`).
    b1: (1, 512) f32, w2: (512, out) f32, b2: (1, out) f32.
    Returns (B, out) f32.
    """
    B, K = d_obs.shape
    K_pad, H = w1_pad.shape
    O = w2.shape[1]
    assert K_pad % tk == 0, "w1 must be pre-padded to a multiple of tk"
    assert H % 2 == 0
    H_half = H // 2
    n_k = K_pad // tk

    # Only the (small) activations are padded / cast per call.
    x = d_obs.astype(jnp.bfloat16)
    if K_pad != K:
        x = jnp.pad(x, ((0, 0), (0, K_pad - K)))

    partial = pl.pallas_call(
        _mlp_kernel,
        out_shape=jax.ShapeDtypeStruct((2, B, O), jnp.float32),
        grid_spec=pltpu.PrefetchScalarGridSpec(
            num_scalar_prefetch=0,
            grid=(2, n_k),  # (hidden half, K tile); K (reduction) last
            in_specs=[
                pl.BlockSpec((B, tk), lambda h, k: (0, k)),        # x tile (bf16)
                pl.BlockSpec((tk, H_half), lambda h, k: (k, h)),   # W1 tile (bf16)
                pl.BlockSpec((1, H_half), lambda h, k: (0, h)),    # b1 half (resident)
                pl.BlockSpec((H_half, O), lambda h, k: (h, 0)),    # W2 half (resident)
            ],
            out_specs=pl.BlockSpec((1, B, O), lambda h, k: (h, 0, 0)),
            scratch_shapes=[pltpu.VMEM((B, H_half), jnp.float32)],
        ),
        compiler_params=pltpu.CompilerParams(
            dimension_semantics=("parallel", "arbitrary")
        ),
    )(x, w1_pad, b1, w2)

    # Combine the two hidden-half partials and add the output bias (tiny).
    return partial[0] + partial[1] + b2


def init_policy_params(key, is_actor):
    """Deterministic synthetic init; shapes match nn.Linear(12000,512)/(512,out)."""
    out_dim = 2 if is_actor else 1
    k1, k2, k3, k4 = jax.random.split(key, 4)
    w1 = jax.random.normal(k1, (IN_FEATURES, HIDDEN), jnp.float32) * (
        1.0 / jnp.sqrt(IN_FEATURES)
    )
    b1 = jax.random.normal(k2, (1, HIDDEN), jnp.float32) * 0.01
    w2 = jax.random.normal(k3, (HIDDEN, out_dim), jnp.float32) * (
        1.0 / jnp.sqrt(HIDDEN)
    )
    b2 = jax.random.normal(k4, (1, out_dim), jnp.float32) * 0.01
    return w1, b1, w2, b2


def policy_forward(prepared_params, d_obs, is_actor, sample_key):
    """Mirrors Policy.forward semantics, fully on-device (no host sync).

    Actor:  returns (action, action_prob) as device scalars for batch row 0
            (action ~ Categorical(logits)).  Callers convert to int/float only
            when they really need host values.
    Critic: returns value predictions, shape (B, 1).
    """
    w1_pad, b1, w2, b2 = prepared_params
    out = mlp_forward(d_obs, w1_pad, b1, w2, b2)  # (B, 2) logits or (B, 1) vals
    if not is_actor:
        return out
    probs = jax.nn.softmax(out, axis=1)
    action = jax.random.categorical(sample_key, out[0])  # scalar int32 (row 0)
    action_prob = probs[0, action]                        # scalar f32
    return action, action_prob


def _reference_mlp(d_obs, w1_pad_bf16, b1, w2, b2):
    """Reference with the same bf16 quantization of x/W1, f32 math otherwise."""
    K = d_obs.shape[1]
    x = d_obs.astype(jnp.bfloat16).astype(jnp.float32)
    w1 = w1_pad_bf16[:K].astype(jnp.float32)
    h = jnp.maximum(
        jnp.dot(x, w1, precision=jax.lax.Precision.HIGHEST) + b1, 0.0
    )
    return jnp.dot(h, w2, precision=jax.lax.Precision.HIGHEST) + b2


if __name__ == "__main__":
    key = jax.random.PRNGKey(0)
    k_obs, k_actor, k_critic, k_sample = jax.random.split(key, 4)

    B = 8  # small batch; the feature dim is fixed at 12000 by the module
    d_obs = jax.random.normal(k_obs, (B, IN_FEATURES), jnp.float32)

    # Actor head (out = 2)
    actor_raw = init_policy_params(k_actor, is_actor=True)
    actor_params = prepare_params(*actor_raw)       # pad + bf16 cast: done ONCE
    logits = mlp_forward(d_obs, *actor_params)
    jax.block_until_ready(logits)
    ref_logits = _reference_mlp(d_obs, *actor_params)
    assert jnp.allclose(logits, ref_logits, atol=3e-2, rtol=3e-2), "actor mismatch"

    action_dev, prob_dev = policy_forward(actor_params, d_obs, True, k_sample)
    jax.block_until_ready((action_dev, prob_dev))
    action, action_prob = int(action_dev), float(prob_dev)  # host sync only in test glue
    assert action in (0, 1) and 0.0 <= action_prob <= 1.0

    # Critic head (out = 1)
    critic_raw = init_policy_params(k_critic, is_actor=False)
    critic_params = prepare_params(*critic_raw)
    vals = policy_forward(critic_params, d_obs, False, k_sample)
    jax.block_until_ready(vals)
    ref_vals = _reference_mlp(d_obs, *critic_params)
    assert jnp.allclose(vals, ref_vals, atol=3e-2, rtol=3e-2), "critic mismatch"

    # TODO(synk): pre_process_* image glue (NumPy slicing/thresholding) is host-side
    # preprocessing, not part of the nn forward; left untranslated.
    print("KERNEL_OK")
</pallas_src>

<mosaic_0001>
module attributes {stable_mosaic.version = 11 : i64} {
  func.func @_mlp_kernel(%arg0: i32, %arg1: i32, %arg2: memref<8x3072xbf16, #tpu.memory_space<vmem>>, %arg3: memref<3072x256xbf16, #tpu.memory_space<vmem>>, %arg4: memref<1x256xf32, #tpu.memory_space<vmem>>, %arg5: memref<256x2xf32, #tpu.memory_space<vmem>>, %arg6: memref<1x8x2xf32, #tpu.memory_space<vmem>>, %arg7: memref<8x256xf32, #tpu.memory_space<vmem>>) attributes {dimension_semantics = [#tpu.dimension_semantics<parallel>, #tpu.dimension_semantics<arbitrary>], iteration_bounds = array<i64: 2, 4>, scalar_prefetch = 0 : i64, scratch_operands = 1 : i64, tpu.core_type = #tpu.core_type<tc>, window_params = [{transform_indices = @transform_0, window_bounds = array<i64: 8, 3072>}, {transform_indices = @transform_1, window_bounds = array<i64: 3072, 256>}, {transform_indices = @transform_2, window_bounds = array<i64: 1, 256>}, {transform_indices = @transform_3, window_bounds = array<i64: 256, 2>}, {transform_indices = @transform_4, window_bounds = array<i64: 1, 8, 2>}]} {
    %c0_i32 = arith.constant 0 : i32
    %0 = arith.cmpi eq, %arg1, %c0_i32 : i32
    %1 = arith.extui %0 : i1 to i32
    %c0_i32_0 = arith.constant 0 : i32
    %2 = arith.cmpi ne, %1, %c0_i32_0 : i32
    scf.if %2 {
      %cst_9 = arith.constant 0.000000e+00 : f32
      %12 = vector.broadcast %cst_9 : f32 to vector<8x256xf32>
      %c0_10 = arith.constant 0 : index
      %c0_11 = arith.constant 0 : index
      %13 = vector.load %arg7[%c0_10, %c0_11] : memref<8x256xf32, #tpu.memory_space<vmem>>, vector<8x256xf32>
      tpu.vector_store %arg7[%c0_10, %c0_11], %12 {strides = array<i32>} : memref<8x256xf32, #tpu.memory_space<vmem>>, vector<8x256xf32>,
    } else {
    }
    %c0 = arith.constant 0 : index
    %c0_1 = arith.constant 0 : index
    %3 = vector.load %arg7[%c0, %c0_1] : memref<8x256xf32, #tpu.memory_space<vmem>>, vector<8x256xf32>
    %c0_2 = arith.constant 0 : index
    %c0_3 = arith.constant 0 : index
    %4 = vector.load %arg2[%c0_2, %c0_3] : memref<8x3072xbf16, #tpu.memory_space<vmem>>, vector<8x3072xbf16>
    %c0_4 = arith.constant 0 : index
    %c0_5 = arith.constant 0 : index
    %5 = vector.load %arg3[%c0_4, %c0_5] : memref<3072x256xbf16, #tpu.memory_space<vmem>>, vector<3072x256xbf16>
    %cst = arith.constant dense<0.000000e+00> : vector<8x256xf32>
    %6 = tpu.matmul %4, %5, %cst {dimension_numbers = #tpu.dot_dimension_numbers<[1], [0], [0], [1], [0, 0, 1, 1], [], []>} : vector<8x3072xbf16>, vector<3072x256xbf16>, vector<8x256xf32> -> vector<8x256xf32>
    %7 = arith.addf %3, %6 : vector<8x256xf32>
    %c0_6 = arith.constant 0 : index
    %c0_7 = arith.constant 0 : index
    %8 = vector.load %arg7[%c0_6, %c0_7] : memref<8x256xf32, #tpu.memory_space<vmem>>, vector<8x256xf32>
    tpu.vector_store %arg7[%c0_6, %c0_7], %7 {strides = array<i32>} : memref<8x256xf32, #tpu.memory_space<vmem>>, vector<8x256xf32>,
    %c3_i32 = arith.constant 3 : i32
    %9 = arith.cmpi eq, %arg1, %c3_i32 : i32
    %10 = arith.extui %9 : i1 to i32
    %c0_i32_8 = arith.constant 0 : i32
    %11 = arith.cmpi ne, %10, %c0_i32_8 : i32
    scf.if %11 {
      %c0_9 = arith.constant 0 : index
      %c0_10 = arith.constant 0 : index
      %12 = vector.load %arg7[%c0_9, %c0_10] : memref<8x256xf32, #tpu.memory_space<vmem>>, vector<8x256xf32>
      %c0_11 = arith.constant 0 : index
      %c0_12 = arith.constant 0 : index
      %13 = vector.load %arg4[%c0_11, %c0_12] : memref<1x256xf32, #tpu.memory_space<vmem>>, vector<1x256xf32>
      %14 = vector.broadcast %13 : vector<1x256xf32> to vector<8x256xf32>
      %15 = arith.addf %12, %14 : vector<8x256xf32>
      %cst_13 = arith.constant 0.000000e+00 : f32
      %16 = vector.broadcast %cst_13 : f32 to vector<8x256xf32>
      %17 = arith.maximumf %15, %16 : vector<8x256xf32>
      %c0_14 = arith.constant 0 : index
      %c0_15 = arith.constant 0 : index
      %18 = vector.load %arg5[%c0_14, %c0_15] : memref<256x2xf32, #tpu.memory_space<vmem>>, vector<256x2xf32>
      %cst_16 = arith.constant dense<0.000000e+00> : vector<8x2xf32>
      %19 = tpu.matmul %17, %18, %cst_16 {dimension_numbers = #tpu.dot_dimension_numbers<[1], [0], [0], [1], [0, 0, 1, 1], [], []>} : vector<8x256xf32>, vector<256x2xf32>, vector<8x2xf32> -> vector<8x2xf32>
      %c0_17 = arith.constant 0 : index
      %c0_18 = arith.constant 0 : index
      %c0_19 = arith.constant 0 : index
      %20 = vector.load %arg6[%c0_17, %c0_18, %c0_19] : memref<1x8x2xf32, #tpu.memory_space<vmem>>, vector<1x8x2xf32>
      %21 = vector.shape_cast %20 : vector<1x8x2xf32> to vector<8x2xf32>
      %22 = vector.shape_cast %19 : vector<8x2xf32> to vector<1x8x2xf32>
      tpu.vector_store %arg6[%c0_17, %c0_18, %c0_19], %22 {strides = array<i32>} : memref<1x8x2xf32, #tpu.memory_space<vmem>>, vector<1x8x2xf32>,
    } else {
    }
    return
  }
  func.func @transform_0(%arg0: i32, %arg1: i32) -> (i32, i32) {
    %c0_i32 = arith.constant 0 : i32
    %c0_i32_0 = arith.constant 0 : i32
    return %c0_i32, %arg1 : i32, i32
  }
  func.func @transform_1(%arg0: i32, %arg1: i32) -> (i32, i32) {
    %c0_i32 = arith.constant 0 : i32
    return %arg1, %arg0 : i32, i32
  }
  func.func @transform_2(%arg0: i32, %arg1: i32) -> (i32, i32) {
    %c0_i32 = arith.constant 0 : i32
    %c0_i32_0 = arith.constant 0 : i32
    return %c0_i32, %arg0 : i32, i32
  }
  func.func @transform_3(%arg0: i32, %arg1: i32) -> (i32, i32) {
    %c0_i32 = arith.constant 0 : i32
    %c0_i32_0 = arith.constant 0 : i32
    return %arg0, %c0_i32 : i32, i32
  }
  func.func @transform_4(%arg0: i32, %arg1: i32) -> (i32, i32, i32) {
    %c0_i32 = arith.constant 0 : i32
    %c0_i32_0 = arith.constant 0 : i32
    %c0_i32_1 = arith.constant 0 : i32
    return %arg0, %c0_i32, %c0_i32_0 : i32, i32, i32
  }
}

</mosaic_0001>

<llo_original>
// kernel: mlp_forward.1
$region0: #{mlp_forward.1}
  #allocation0 [shape = 'u32[]', space=smem, size = 0x4, offset = 0x4, fixed_abs, tag = 'smem constant byte address 0x4 - core index']
  #allocation1 [shape = 'u32[144,128]{1,0:T(1,128)}', space=vmem, size = 0x12000, scoped, tag = 'internal scratch']
  #allocation2 [shape = 'f32[8,256]{1,0:T(8,128)}', space=vmem, size = 0x2000, scoped, tag = 'scratch operand']
  %s0 = inlined_call_operand.vmem [shape: bf16[8,12288], index: 0, kind: input, shape index: {}]
  %s1 = inlined_call_operand.hbm [shape: bf16[12288,512], index: 1, kind: input, shape index: {}]
  %s2 = inlined_call_operand.hbm [shape: f32[1,512], index: 2, kind: input, shape index: {}]
  %s3 = inlined_call_operand.vmem [shape: f32[512,2], index: 3, kind: input, shape index: {}]
  %s4 = inlined_call_operand.vmem [shape: f32[2,8,2], index: 4, kind: output, shape index: {}]
  %s5 = sld [smem:[#allocation0]]
  $region65: #{mlp_forward.1} parent=0
    _
  %s7 = ssub.s32 1, %s5
  %s8 = scalar_select 0, %s7, %s5
  $region1: #{mlp_forward.1} parent=0
    #allocation3 [shape = 'u8[3145728]{0}', space=vmem, size = 0x300000, scoped, tag = 'input window, operand 1']
    #allocation4 [shape = 's32[2]{0}', space=sflag, size = 0x8, scoped, tag = 'scoped memory for mlp_forward.1']
    #allocation5 [shape = 'u8[2048]{0}', space=vmem, size = 0x800, scoped, tag = 'input window, operand 2']
    #allocation6 [shape = 's32[2]{0}', space=sflag, size = 0x8, scoped, tag = 'scoped memory for mlp_forward.1']
    %9 = vsyncpa [#allocation4], 0
    %s10 = scalar_lea.sflag [#allocation4], 1
    %11 = vsyncpa %s10, 0
    %12 = vsyncpa [#allocation6], 0
    %s13 = scalar_lea.sflag [#allocation6], 1
    %14 = vsyncpa %s13, 0
    loop: start=0, step=1, limit=10
    $region2: #{mlp_forward.1} parent=1 // loop_pre_header
      _
    $region3: #{mlp_forward.1} parent=1 // loop_header
      %s16 = sphi 0, %s20
      %p17 = scmp.ge.s32.totalorder %s16, 10
      %s23 = sphi 0, %s35
      %s24 = sphi 0, %s31
      %s25 = sphi 0, %s23
      %s26 = sphi 0, %s24
      %s27 = sphi 0, %s25
      %s28 = sphi 0, %s26
      %s38 = sphi 0, %s40
      %s41 = sphi 0, %s38
      %s42 = sphi 0, %s41
      %s58 = sphi 0, %s42
      %s66 = sphi 0, %s68
      %s69 = sphi 0, %s66
      %s70 = sphi 0, %s69
      %s86 = sphi 0, %s70
      %s92 = sphi 0, %s94
      %s95 = sphi 0, %s92
      %s96 = sphi 0, %s95
      %s112 = sphi 0, %s96
      %s118 = sphi 0, %s120
      %s121 = sphi 0, %s118
      %s122 = sphi 0, %s121
      %s138 = sphi 0, %s122
      %s144 = sphi 0, %s146
      %s147 = sphi 0, %s144
      %s148 = sphi 0, %s147
      %s164 = sphi 0, %s148
    $region4: #{mlp_forward.1} parent=1 // loop_header_branch
      %19 = sbr.rel (%p17) target = $region8
    $region5: #{mlp_forward.1} parent=1 // loop_body
      %s21 = ssub.s32 %s16, 1
      %s22 = ssub.s32 %s16, 2
      %s29 = sadd.s32 1, %s24
      %p30 = scmp.ge.s32.totalorder %s29, 4
      %s31 = scalar_select %p30, 0, %s29
      %s32 = sadd.s32 1, %s23
      %s33 = scalar_select %p30, %s32, %s23
      %p34 = scmp.ge.s32.totalorder %s33, 2
      %s35 = scalar_select %p34, 0, %s33
      %s36 = ssub.s32 %s24, %s31
      %p37 = scmp.eq.s32.totalorder %s36, 0
      %s39 = sadd.s32 %s38, 1
      %s40 = scalar_select %p37, %s38, %s39
      %p43 = pneg %p37
      %p44 = scmp.eq.s32.totalorder %s16, 7
      %p45 = por %p43, %p44
      %p46 = scmp.ne.s32.totalorder %s38, %s41
      %p47 = scmp.eq.s32.totalorder %s16, 0
      %p48 = por %p46, %p47
      %p49 = scmp.ne.s32.totalorder %s38, %s41
      %p50 = scmp.eq.s32.totalorder %s21, 7
      %p51 = por %p49, %p50
      %p52 = scmp.ne.s32.totalorder %s41, %s42
      %p53 = scmp.eq.s32.totalorder %s21, 0
      %p54 = por %p52, %p53
      %p55 = scmp.ne.s32.totalorder %s41, %s42
      %p56 = scmp.eq.s32.totalorder %s22, 7
      %p57 = por %p55, %p56
      %p59 = scmp.ne.s32.totalorder %s42, %s58
      %p60 = scmp.eq.s32.totalorder %s22, 0
      %p61 = por %p59, %p60
      %s62 = ssub.s32 %s24, %s31
      %s63 = ssub.s32 %s23, %s35
      %s64 = sor.u32 %s62, %s63
      %p65 = scmp.eq.s32.totalorder %s64, 0
      %s67 = sadd.s32 %s66, 1
      %s68 = scalar_select %p65, %s66, %s67
      %p71 = pneg %p65
      %p72 = scmp.eq.s32.totalorder %s16, 7
      %p73 = por %p71, %p72
      %p74 = scmp.ne.s32.totalorder %s66, %s69
      %p75 = scmp.eq.s32.totalorder %s16, 0
      %p76 = por %p74, %p75
      %p77 = scmp.ne.s32.totalorder %s66, %s69
      %p78 = scmp.eq.s32.totalorder %s21, 7
      %p79 = por %p77, %p78
      %p80 = scmp.ne.s32.totalorder %s69, %s70
      %p81 = scmp.eq.s32.totalorder %s21, 0
      %p82 = por %p80, %p81
      %p83 = scmp.ne.s32.totalorder %s69, %s70
      %p84 = scmp.eq.s32.totalorder %s22, 7
      %p85 = por %p83, %p84
      %p87 = scmp.ne.s32.totalorder %s70, %s86
      %p88 = scmp.eq.s32.totalorder %s22, 0
      %p89 = por %p87, %p88
      %s90 = ssub.s32 %s23, %s35
      %p91 = scmp.eq.s32.totalorder %s90, 0
      %s93 = sadd.s32 %s92, 1
      %s94 = scalar_select %p91, %s92, %s93
      %p97 = pneg %p91
      %p98 = scmp.eq.s32.totalorder %s16, 7
      %p99 = por %p97, %p98
      %p100 = scmp.ne.s32.totalorder %s92, %s95
      %p101 = scmp.eq.s32.totalorder %s16, 0
      %p102 = por %p100, %p101
      %p103 = scmp.ne.s32.totalorder %s92, %s95
      %p104 = scmp.eq.s32.totalorder %s21, 7
      %p105 = por %p103, %p104
      %p106 = scmp.ne.s32.totalorder %s95, %s96
      %p107 = scmp.eq.s32.totalorder %s21, 0
      %p108 = por %p106, %p107
      %p109 = scmp.ne.s32.totalorder %s95, %s96
      %p110 = scmp.eq.s32.totalorder %s22, 7
      %p111 = por %p109, %p110
      %p113 = scmp.ne.s32.totalorder %s96, %s112
      %p114 = scmp.eq.s32.totalorder %s22, 0
      %p115 = por %p113, %p114
      %s116 = ssub.s32 %s23, %s35
      %p117 = scmp.eq.s32.totalorder %s116, 0
      %s119 = sadd.s32 %s118, 1
      %s120 = scalar_select %p117, %s118, %s119
      %p123 = pneg %p117
      %p124 = scmp.eq.s32.totalorder %s16, 7
      %p125 = por %p123, %p124
      %p126 = scmp.ne.s32.totalorder %s118, %s121
      %p127 = scmp.eq.s32.totalorder %s16, 0
      %p128 = por %p126, %p127
      %p129 = scmp.ne.s32.totalorder %s118, %s121
      %p130 = scmp.eq.s32.totalorder %s21, 7
      %p131 = por %p129, %p130
      %p132 = scmp.ne.s32.totalorder %s121, %s122
      %p133 = scmp.eq.s32.totalorder %s21, 0
      %p134 = por %p132, %p133
      %p135 = scmp.ne.s32.totalorder %s121, %s122
      %p136 = scmp.eq.s32.totalorder %s22, 7
      %p137 = por %p135, %p136
      %p139 = scmp.ne.s32.totalorder %s122, %s138
      %p140 = scmp.eq.s32.totalorder %s22, 0
      %p141 = por %p139, %p140
      %s142 = ssub.s32 %s23, %s35
      %p143 = scmp.eq.s32.totalorder %s142, 0
      %s145 = sadd.s32 %s144, 1
      %s146 = scalar_select %p143, %s144, %s145
      %p149 = pneg %p143
      %p150 = scmp.eq.s32.totalorder %s16, 7
      %p151 = por %p149, %p150
      %p152 = scmp.ne.s32.totalorder %s144, %s147
      %p153 = scmp.eq.s32.totalorder %s16, 0
      %p154 = por %p152, %p153
      %p155 = scmp.ne.s32.totalorder %s144, %s147
      %p156 = scmp.eq.s32.totalorder %s21, 7
      %p157 = por %p155, %p156
      %p158 = scmp.ne.s32.totalorder %s147, %s148
      %p159 = scmp.eq.s32.totalorder %s21, 0
      %p160 = por %p158, %p159
      %p161 = scmp.ne.s32.totalorder %s147, %s148
      %p162 = scmp.eq.s32.totalorder %s22, 7
      %p163 = por %p161, %p162
      %p165 = scmp.ne.s32.totalorder %s148, %s164
      %p166 = scmp.eq.s32.totalorder %s22, 0
      %p167 = por %p165, %p166
      %p168 = scmp.le.s32.totalorder 1, %s16
      %p169 = scmp.lt.s32.totalorder %s16, 9
      %p170 = pnand %p168, %p169
      %p171 = pneg %p170
      // Predicated region
      $region9: #{mlp_forward.1} parent=5 // pred_check
        _
      $region10: #{mlp_forward.1} parent=5 // pred_check_branch
        %173 = sbr.rel (%p170) target = $region12
      $region11: #{mlp_forward.1} parent=5 // pred_region
        %s174 = ssub.s32 %s16, 1
      $region12: #{mlp_forward.1} parent=5 // pred_fallthru
        _
      %p175 = scmp.lt.s32.totalorder %s16, 8
      // Predicated region
      $region13: #{mlp_forward.1} parent=5 // pred_check
        %p176 = pneg %p175
      $region14: #{mlp_forward.1} parent=5 // pred_check_branch
        %178 = sbr.rel (%p176) target = $region16
      $region15: #{mlp_forward.1} parent=5 // pred_region
        // Predicated region
        $region17: #{mlp_forward.1} parent=15 // pred_check
          %p179 = pneg %p48
        $region18: #{mlp_forward.1} parent=15 // pred_check_branch
          %181 = sbr.rel (%p179) target = $region20
        $region19: #{mlp_forward.1} parent=15 // pred_region
          %s182 = smul.u32 24, %s24
          %p183 = scmp.lt.s32.totalorder %s182, 95
          %s184 = scalar_select %p183, %s182, 95
          %s185 = smul.addr %s184, 4
          %s186 = scalar_lea.vmem %s0, %s185
          %s187 = smul.u32 24, %s24
        $region20: #{mlp_forward.1} parent=15 // pred_fallthru
          _
        // Predicated region
        $region21: #{mlp_forward.1} parent=15 // pred_check
          %p188 = pneg %p76
        $region22: #{mlp_forward.1} parent=15 // pred_check_branch
          %190 = sbr.rel (%p188) target = $region24
        $region23: #{mlp_forward.1} parent=15 // pred_region
          %s191 = sand.u32 %s66, 1
          %s192 = scalar_lea.sflag [#allocation4], %s191
          %s193 = sand.u32 %s66, 1
          %s194 = smul.addr %s193, 3072
          %s195 = scalar_lea.vmem [#allocation3], %s194
          %s196 = smul.u32 384, %s24
          %s197 = smul.u32 2, %s23
          %s199 = ssub.s32 49152, 49152
          %200 = vsyncadd %s192, %s199
          %s201 = smul.addr %s196, 4
          %s202 = sadd.s32 %s197, %s201
          %s203 = smul.addr %s202, 64
          %s204 = scalar_lea.hbm %s1, %s203
          %s205 = sshll.u32 %s195, 4
          %s206 = int_to_ptr.vmem [resolvable:$true] %s205
          %211 = dma.hbm_to_vmem [thread:$0]  %s204, 49152, %s206, %s192, 256, 128, 8
        $region24: #{mlp_forward.1} parent=15 // pred_fallthru
          _
        // Predicated region
        $region25: #{mlp_forward.1} parent=15 // pred_check
          %p212 = pneg %p102
        $region26: #{mlp_forward.1} parent=15 // pred_check_branch
          %214 = sbr.rel (%p212) target = $region28
        $region27: #{mlp_forward.1} parent=15 // pred_region
          %s215 = sand.u32 %s92, 1
          %s216 = scalar_lea.sflag [#allocation6], %s215
          %s217 = sand.u32 %s92, 1
          %s218 = smul.addr %s217, 2
          %s219 = scalar_lea.vmem [#allocation5], %s218
          %s220 = smul.u32 2, %s23
          %s222 = ssub.s32 32, 32
          %223 = vsyncadd %s216, %s222
          %s224 = smul.addr %s220, 16
          %s225 = scalar_lea.hbm %s2, %s224
          %s227 = sshll.u32 %s219, 4
          %s228 = int_to_ptr.vmem [resolvable:$true] %s227
          %230 = dma.hbm_to_vmem [thread:$0]  %s225, 32, %s228, %s216
        $region28: #{mlp_forward.1} parent=15 // pred_fallthru
          _
        // Predicated region
        $region29: #{mlp_forward.1} parent=15 // pred_check
          %p231 = pneg %p128
        $region30: #{mlp_forward.1} parent=15 // pred_check_branch
          %233 = sbr.rel (%p231) target = $region32
        $region31: #{mlp_forward.1} parent=15 // pred_region
          %s234 = smul.u32 32, %s23
          %p235 = scmp.lt.s32.totalorder %s234, 63
          %s236 = scalar_select %p235, %s234, 63
          %s237 = smul.addr %s236, 8
          %s238 = scalar_lea.vmem %s3, %s237
          %s239 = smul.u32 32, %s23
        $region32: #{mlp_forward.1} parent=15 // pred_fallthru
          _
      $region16: #{mlp_forward.1} parent=5 // pred_fallthru
        _
      %p240 = scmp.le.s32.totalorder 1, %s16
      %p241 = scmp.lt.s32.totalorder %s16, 9
      %p242 = pnand %p240, %p241
      %p243 = pneg %p242
      // Predicated region
      $region33: #{mlp_forward.1} parent=5 // pred_check
        _
      $region34: #{mlp_forward.1} parent=5 // pred_check_branch
        %245 = sbr.rel (%p242) target = $region36
      $region35: #{mlp_forward.1} parent=5 // pred_region
        %s246 = ssub.s32 %s16, 1
        %s247 = sand.u32 %s69, 1
        %s248 = scalar_lea.sflag [#allocation4], %s247
        %s249 = sand.u32 %s69, 1
        %s250 = smul.addr %s249, 3072
        %s251 = scalar_lea.vmem [#allocation3], %s250
        // Predicated region
        $region37: #{mlp_forward.1} parent=35 // pred_check
          %p252 = pneg %p82
        $region38: #{mlp_forward.1} parent=35 // pred_check_branch
          %254 = sbr.rel (%p252) target = $region40
        $region39: #{mlp_forward.1} parent=35 // pred_region
          %255 = dma.done %s248, 49152
        $region40: #{mlp_forward.1} parent=35 // pred_fallthru
          _
        %s256 = sand.u32 %s95, 1
        %s257 = scalar_lea.sflag [#allocation6], %s256
        %s258 = sand.u32 %s95, 1
        %s259 = smul.addr %s258, 2
        %s260 = scalar_lea.vmem [#allocation5], %s259
        // Predicated region
        $region41: #{mlp_forward.1} parent=35 // pred_check
          %p261 = pneg %p108
        $region42: #{mlp_forward.1} parent=35 // pred_check_branch
          %263 = sbr.rel (%p261) target = $region44
        $region43: #{mlp_forward.1} parent=35 // pred_region
          %264 = dma.done %s257, 32
        $region44: #{mlp_forward.1} parent=35 // pred_fallthru
          _
        %s265 = smul.u32 24, %s26
        %p266 = scmp.lt.s32.totalorder %s265, 95
        %s267 = scalar_select %p266, %s265, 95
        %s268 = smul.addr %s267, 4
        %s269 = scalar_lea.vmem %s0, %s268
        %p270 = pneg %p54
        %p271 = pneg %p51
        %s272 = sand.u32 %s69, 1
        %s273 = scalar_lea.sflag [#allocation4], %s272
        %s274 = sand.u32 %s69, 1
        %s275 = smul.addr %s274, 3072
        %s276 = scalar_lea.vmem [#allocation3], %s275
        %p277 = pneg %p82
        %p278 = pneg %p79
        %s279 = sand.u32 %s95, 1
        %s280 = scalar_lea.sflag [#allocation6], %s279
        %s281 = sand.u32 %s95, 1
        %s282 = smul.addr %s281, 2
        %s283 = scalar_lea.vmem [#allocation5], %s282
        %p284 = pneg %p108
        %p285 = pneg %p105
        %s286 = smul.u32 32, %s25
        %p287 = scmp.lt.s32.totalorder %s286, 63
        %s288 = scalar_select %p287, %s286, 63
        %s289 = smul.addr %s288, 8
        %s290 = scalar_lea.vmem %s3, %s289
        %p291 = pneg %p134
        %p292 = pneg %p131
        %p293 = pneg %p160
        %p294 = pneg %p157
        %p295 = scmp.lt.s32.totalorder %s25, 1
        %s296 = scalar_select %p295, %s25, 1
        %s297 = smul.addr %s296, 8
        %s298 = scalar_lea.vmem %s4, %s297
        %s299 = smul.u32 24, %s26
        %p300 = scmp.lt.s32.totalorder %s299, 95
        %s301 = scalar_select %p300, %s299, 95
        %s302 = smul.addr %s301, 4
        %s303 = scalar_lea.vmem %s0, %s302
        %s304 = smul.u32 24, %s26
        %s305 = smul.u32 384, %s26
        %s306 = smul.u32 2, %s25
        %s307 = smul.u32 2, %s25
        %s308 = smul.u32 32, %s25
        %p309 = scmp.lt.s32.totalorder %s308, 63
        %s310 = scalar_select %p309, %s308, 63
        %s311 = smul.addr %s310, 8
        %s312 = scalar_lea.vmem %s3, %s311
        %s313 = smul.u32 32, %s25
        %p314 = scmp.lt.s32.totalorder %s25, 1
        %s315 = scalar_select %p314, %s25, 1
        %s316 = smul.addr %s315, 8
        %s317 = scalar_lea.vmem %s4, %s316
        %p318 = scmp.eq.s32.totalorder %s26, 0
        // Predicated region
        $region45: #{mlp_forward.1} parent=35 // pred_check
          %p319 = pneg %p318
        $region46: #{mlp_forward.1} parent=35 // pred_check_branch
          %321 = sbr.rel (%p319) target = $region48
        $region47: #{mlp_forward.1} parent=35 // pred_region
          %322 = vst [vmem:[#allocation2] sm:$0xff] 0.0
          %323 = vst [vmem:[#allocation2 + $0x8] sm:$0xff] 0.0
        $region48: #{mlp_forward.1} parent=35 // pred_fallthru
          _
        %v324 = vld [vmem:[#allocation2] sm:$0xff]
        %v325 = vld [vmem:[#allocation2 + $0x8] sm:$0xff]
        %v326 = vld [vmem:[%s303] sm:$0xff]
        %v327 = vld [vmem:[%s303 + $0x8] sm:$0xff]
        %v328 = vld [vmem:[%s303 + $0x10] sm:$0xff]
        %v329 = vld [vmem:[%s303 + $0x18] sm:$0xff]
        %v330 = vld [vmem:[%s303 + $0x20] sm:$0xff]
        %v331 = vld [vmem:[%s303 + $0x28] sm:$0xff]
        %v332 = vld [vmem:[%s303 + $0x30] sm:$0xff]
        %v333 = vld [vmem:[%s303 + $0x38] sm:$0xff]
        %v334 = vld [vmem:[%s303 + $0x40] sm:$0xff]
        %v335 = vld [vmem:[%s303 + $0x48] sm:$0xff]
        %v336 = vld [vmem:[%s303 + $0x50] sm:$0xff]
        %v337 = vld [vmem:[%s303 + $0x58] sm:$0xff]
        %v338 = vld [vmem:[%s251] sm:$0xff]
        %v339 = vld [vmem:[%s251 + $0x8] sm:$0xff]
        %v340 = vld [vmem:[%s251 + $0x10] sm:$0xff]
        %v341 = vld [vmem:[%s251 + $0x18] sm:$0xff]
        %v342 = vld [vmem:[%s251 + $0x20] sm:$0xff]
        %v343 = vld [vmem:[%s251 + $0x28] sm:$0xff]
        %v344 = vld [vmem:[%s251 + $0x30] sm:$0xff]
        %v345 = vld [vmem:[%s251 + $0x38] sm:$0xff]
        %v346 = vld [vmem:[%s251 + $0x40] sm:$0xff]
        %v347 = vld [vmem:[%s251 + $0x48] sm:$0xff]
        %v348 = vld [vmem:[%s251 + $0x50] sm:$0xff]
        %v349 = vld [vmem:[%s251 + $0x58] sm:$0xff]
        %v350 = vld [vmem:[%s251 + $0x60] sm:$0xff]
        %v351 = vld [vmem:[%s251 + $0x68] sm:$0xff]
        %v352 = vld [vmem:[%s251 + $0x70] sm:$0xff]
        %v353 = vld [vmem:[%s251 + $0x78] sm:$0xff]
        %v354 = vld [vmem:[%s251 + $0x80] sm:$0xff]
        %v355 = vld [vmem:[%s251 + $0x88] sm:$0xff]
        %v356 = vld [vmem:[%s251 + $0x90] sm:$0xff]
        %v357 = vld [vmem:[%s251 + $0x98] sm:$0xff]
        %v358 = vld [vmem:[%s251 + $0xa0] sm:$0xff]
        %v359 = vld [vmem:[%s251 + $0xa8] sm:$0xff]
        %v360 = vld [vmem:[%s251 + $0xb0] sm:$0xff]
        %v361 = vld [vmem:[%s251 + $0xb8] sm:$0xff]
        %v362 = vld [vmem:[%s251 + $0xc0] sm:$0xff]
        %v363 = vld [vmem:[%s251 + $0xc8] sm:$0xff]
        %v364 = vld [vmem:[%s251 + $0xd0] sm:$0xff]
        %v365 = vld [vmem:[%s251 + $0xd8] sm:$0xff]
        %v366 = vld [vmem:[%s251 + $0xe0] sm:$0xff]
        %v367 = vld [vmem:[%s251 + $0xe8] sm:$0xff]
        %v368 = vld [vmem:[%s251 + $0xf0] sm:$0xff]
        %v369 = vld [vmem:[%s251 + $0xf8] sm:$0xff]
        %v370 = vld [vmem:[%s251 + $0x100] sm:$0xff]
        %v371 = vld [vmem:[%s251 + $0x108] sm:$0xff]
        %v372 = vld [vmem:[%s251 + $0x110] sm:$0xff]
        %v373 = vld [vmem:[%s251 + $0x118] sm:$0xff]
        %v374 = vld [vmem:[%s251 + $0x120] sm:$0xff]
        %v375 = vld [vmem:[%s251 + $0x128] sm:$0xff]
        %v376 = vld [vmem:[%s251 + $0x130] sm:$0xff]
        %v377 = vld [vmem:[%s251 + $0x138] sm:$0xff]
        %v378 = vld [vmem:[%s251 + $0x140] sm:$0xff]
        %v379 = vld [vmem:[%s251 + $0x148] sm:$0xff]
        %v380 = vld [vmem:[%s251 + $0x150] sm:$0xff]
        %v381 = vld [vmem:[%s251 + $0x158] sm:$0xff]
        %v382 = vld [vmem:[%s251 + $0x160] sm:$0xff]
        %v383 = vld [vmem:[%s251 + $0x168] sm:$0xff]
        %v384 = vld [vmem:[%s251 + $0x170] sm:$0xff]
        %v385 = vld [vmem:[%s251 + $0x178] sm:$0xff]
        %v386 = vld [vmem:[%s251 + $0x180] sm:$0xff]
        %v387 = vld [vmem:[%s251 + $0x188] sm:$0xff]
        %v388 = vld [vmem:[%s251 + $0x190] sm:$0xff]
        %v389 = vld [vmem:[%s251 + $0x198] sm:$0xff]
        %v390 = vld [vmem:[%s251 + $0x1a0] sm:$0xff]
        %v391 = vld [vmem:[%s251 + $0x1a8] sm:$0xff]
        %v392 = vld [vmem:[%s251 + $0x1b0] sm:$0xff]
        %v393 = vld [vmem:[%s251 + $0x1b8] sm:$0xff]
        %v394 = vld [vmem:[%s251 + $0x1c0] sm:$0xff]
        %v395 = vld [vmem:[%s251 + $0x1c8] sm:$0xff]
        %v396 = vld [vmem:[%s251 + $0x1d0] sm:$0xff]
        %v397 = vld [vmem:[%s251 + $0x1d8] sm:$0xff]
        %v398 = vld [vmem:[%s251 + $0x1e0] sm:$0xff]
        %v399 = vld [vmem:[%s251 + $0x1e8] sm:$0xff]
        %v400 = vld [vmem:[%s251 + $0x1f0] sm:$0xff]
        %v401 = vld [vmem:[%s251 + $0x1f8] sm:$0xff]
        %v402 = vld [vmem:[%s251 + $0x200] sm:$0xff]
        %v403 = vld [vmem:[%s251 + $0x208] sm:$0xff]
        %v404 = vld [vmem:[%s251 + $0x210] sm:$0xff]
        %v405 = vld [vmem:[%s251 + $0x218] sm:$0xff]
        %v406 = vld [vmem:[%s251 + $0x220] sm:$0xff]
        %v407 = vld [vmem:[%s251 + $0x228] sm:$0xff]
        %v408 = vld [vmem:[%s251 + $0x230] sm:$0xff]
        %v409 = vld [vmem:[%s251 + $0x238] sm:$0xff]
        %v410 = vld [vmem:[%s251 + $0x240] sm:$0xff]
        %v411 = vld [vmem:[%s251 + $0x248] sm:$0xff]
        %v412 = vld [vmem:[%s251 + $0x250] sm:$0xff]
        %v413 = vld [vmem:[%s251 + $0x258] sm:$0xff]
        %v414 = vld [vmem:[%s251 + $0x260] sm:$0xff]
        %v415 = vld [vmem:[%s251 + $0x268] sm:$0xff]
        %v416 = vld [vmem:[%s251 + $0x270] sm:$0xff]
        %v417 = vld [vmem:[%s251 + $0x278] sm:$0xff]
        %v418 = vld [vmem:[%s251 + $0x280] sm:$0xff]
        %v419 = vld [vmem:[%s251 + $0x288] sm:$0xff]
        %v420 = vld [vmem:[%s251 + $0x290] sm:$0xff]
        %v421 = vld [vmem:[%s251 + $0x298] sm:$0xff]
        %v422 = vld [vmem:[%s251 + $0x2a0] sm:$0xff]
        %v423 = vld [vmem:[%s251 + $0x2a8] sm:$0xff]
        %v424 = vld [vmem:[%s251 + $0x2b0] sm:$0xff]
        %v425 = vld [vmem:[%s251 + $0x2b8] sm:$0xff]
        %v426 = vld [vmem:[%s251 + $0x2c0] sm:$0xff]
        %v427 = vld [vmem:[%s251 + $0x2c8] sm:$0xff]
        %v428 = vld [vmem:[%s251 + $0x2d0] sm:$0xff]
        %v429 = vld [vmem:[%s251 + $0x2d8] sm:$0xff]
        %v430 = vld [vmem:[%s251 + $0x2e0] sm:$0xff]
        %v431 = vld [vmem:[%s251 + $0x2e8] sm:$0xff]
        %v432 = vld [vmem:[%s251 + $0x2f0] sm:$0xff]
        %v433 = vld [vmem:[%s251 + $0x2f8] sm:$0xff]
        %v434 = vld [vmem:[%s251 + $0x300] sm:$0xff]
        %v435 = vld [vmem:[%s251 + $0x308] sm:$0xff]
        %v436 = vld [vmem:[%s251 + $0x310] sm:$0xff]
        %v437 = vld [vmem:[%s251 + $0x318] sm:$0xff]
        %v438 = vld [vmem:[%s251 + $0x320] sm:$0xff]
        %v439 = vld [vmem:[%s251 + $0x328] sm:$0xff]
        %v440 = vld [vmem:[%s251 + $0x330] sm:$0xff]
        %v441 = vld [vmem:[%s251 + $0x338] sm:$0xff]
        %v442 = vld [vmem:[%s251 + $0x340] sm:$0xff]
        %v443 = vld [vmem:[%s251 + $0x348] sm:$0xff]
        %v444 = vld [vmem:[%s251 + $0x350] sm:$0xff]
        %v445 = vld [vmem:[%s251 + $0x358] sm:$0xff]
        %v446 = vld [vmem:[%s251 + $0x360] sm:$0xff]
        %v447 = vld [vmem:[%s251 + $0x368] sm:$0xff]
        %v448 = vld [vmem:[%s251 + $0x370] sm:$0xff]
        %v449 = vld [vmem:[%s251 + $0x378] sm:$0xff]
        %v450 = vld [vmem:[%s251 + $0x380] sm:$0xff]
        %v451 = vld [vmem:[%s251 + $0x388] sm:$0xff]
        %v452 = vld [vmem:[%s251 + $0x390] sm:$0xff]
        %v453 = vld [vmem:[%s251 + $0x398] sm:$0xff]
        %v454 = vld [vmem:[%s251 + $0x3a0] sm:$0xff]
        %v455 = vld [vmem:[%s251 + $0x3a8] sm:$0xff]
        %v456 = vld [vmem:[%s251 + $0x3b0] sm:$0xff]
        %v457 = vld [vmem:[%s251 + $0x3b8] sm:$0xff]
        %v458 = vld [vmem:[%s251 + $0x3c0] sm:$0xff]
        %v459 = vld [vmem:[%s251 + $0x3c8] sm:$0xff]
        %v460 = vld [vmem:[%s251 + $0x3d0] sm:$0xff]
        %v461 = vld [vmem:[%s251 + $0x3d8] sm:$0xff]
        %v462 = vld [vmem:[%s251 + $0x3e0] sm:$0xff]
        %v463 = vld [vmem:[%s251 + $0x3e8] sm:$0xff]
        %v464 = vld [vmem:[%s251 + $0x3f0] sm:$0xff]
        %v465 = vld [vmem:[%s251 + $0x3f8] sm:$0xff]
        %v466 = vld [vmem:[%s251 + $0x400] sm:$0xff]
        %v467 = vld [vmem:[%s251 + $0x408] sm:$0xff]
        %v468 = vld [vmem:[%s251 + $0x410] sm:$0xff]
        %v469 = vld [vmem:[%s251 + $0x418] sm:$0xff]
        %v470 = vld [vmem:[%s251 + $0x420] sm:$0xff]
        %v471 = vld [vmem:[%s251 + $0x428] sm:$0xff]
        %v472 = vld [vmem:[%s251 + $0x430] sm:$0xff]
        %v473 = vld [vmem:[%s251 + $0x438] sm:$0xff]
        %v474 = vld [vmem:[%s251 + $0x440] sm:$0xff]
        %v475 = vld [vmem:[%s251 + $0x448] sm:$0xff]
        %v476 = vld [vmem:[%s251 + $0x450] sm:$0xff]
        %v477 = vld [vmem:[%s251 + $0x458] sm:$0xff]
        %v478 = vld [vmem:[%s251 + $0x460] sm:$0xff]
        %v479 = vld [vmem:[%s251 + $0x468] sm:$0xff]
        %v480 = vld [vmem:[%s251 + $0x470] sm:$0xff]
        %v481 = vld [vmem:[%s251 + $0x478] sm:$0xff]
        %v482 = vld [vmem:[%s251 + $0x480] sm:$0xff]
        %v483 = vld [vmem:[%s251 + $0x488] sm:$0xff]
        %v484 = vld [vmem:[%s251 + $0x490] sm:$0xff]
        %v485 = vld [vmem:[%s251 + $0x498] sm:$0xff]
        %v486 = vld [vmem:[%s251 + $0x4a0] sm:$0xff]
        %v487 = vld [vmem:[%s251 + $0x4a8] sm:$0xff]
        %v488 = vld [vmem:[%s251 + $0x4b0] sm:$0xff]
        %v489 = vld [vmem:[%s251 + $0x4b8] sm:$0xff]
        %v490 = vld [vmem:[%s251 + $0x4c0] sm:$0xff]
        %v491 = vld [vmem:[%s251 + $0x4c8] sm:$0xff]
        %v492 = vld [vmem:[%s251 + $0x4d0] sm:$0xff]
        %v493 = vld [vmem:[%s251 + $0x4d8] sm:$0xff]
        %v494 = vld [vmem:[%s251 + $0x4e0] sm:$0xff]
        %v495 = vld [vmem:[%s251 + $0x4e8] sm:$0xff]
        %v496 = vld [vmem:[%s251 + $0x4f0] sm:$0xff]
        %v497 = vld [vmem:[%s251 + $0x4f8] sm:$0xff]
        %v498 = vld [vmem:[%s251 + $0x500] sm:$0xff]
        %v499 = vld [vmem:[%s251 + $0x508] sm:$0xff]
        %v500 = vld [vmem:[%s251 + $0x510] sm:$0xff]
        %v501 = vld [vmem:[%s251 + $0x518] sm:$0xff]
        %v502 = vld [vmem:[%s251 + $0x520] sm:$0xff]
        %v503 = vld [vmem:[%s251 + $0x528] sm:$0xff]
        %v504 = vld [vmem:[%s251 + $0x530] sm:$0xff]
        %v505 = vld [vmem:[%s251 + $0x538] sm:$0xff]
        %v506 = vld [vmem:[%s251 + $0x540] sm:$0xff]
        %v507 = vld [vmem:[%s251 + $0x548] sm:$0xff]
        %v508 = vld [vmem:[%s251 + $0x550] sm:$0xff]
        %v509 = vld [vmem:[%s251 + $0x558] sm:$0xff]
        %v510 = vld [vmem:[%s251 + $0x560] sm:$0xff]
        %v511 = vld [vmem:[%s251 + $0x568] sm:$0xff]
        %v512 = vld [vmem:[%s251 + $0x570] sm:$0xff]
        %v513 = vld [vmem:[%s251 + $0x578] sm:$0xff]
        %v514 = vld [vmem:[%s251 + $0x580] sm:$0xff]
        %v515 = vld [vmem:[%s251 + $0x588] sm:$0xff]
        %v516 = vld [vmem:[%s251 + $0x590] sm:$0xff]
        %v517 = vld [vmem:[%s251 + $0x598] sm:$0xff]
        %v518 = vld [vmem:[%s251 + $0x5a0] sm:$0xff]
        %v519 = vld [vmem:[%s251 + $0x5a8] sm:$0xff]
        %v520 = vld [vmem:[%s251 + $0x5b0] sm:$0xff]
        %v521 = vld [vmem:[%s251 + $0x5b8] sm:$0xff]
        %v522 = vld [vmem:[%s251 + $0x5c0] sm:$0xff]
        %v523 = vld [vmem:[%s251 + $0x5c8] sm:$0xff]
        %v524 = vld [vmem:[%s251 + $0x5d0] sm:$0xff]
        %v525 = vld [vmem:[%s251 + $0x5d8] sm:$0xff]
        %v526 = vld [vmem:[%s251 + $0x5e0] sm:$0xff]
        %v527 = vld [vmem:[%s251 + $0x5e8] sm:$0xff]
        %v528 = vld [vmem:[%s251 + $0x5f0] sm:$0xff]
        %v529 = vld [vmem:[%s251 + $0x5f8] sm:$0xff]
        %v530 = vld [vmem:[%s251 + $0x600] sm:$0xff]
        %v531 = vld [vmem:[%s251 + $0x608] sm:$0xff]
        %v532 = vld [vmem:[%s251 + $0x610] sm:$0xff]
        %v533 = vld [vmem:[%s251 + $0x618] sm:$0xff]
        %v534 = vld [vmem:[%s251 + $0x620] sm:$0xff]
        %v535 = vld [vmem:[%s251 + $0x628] sm:$0xff]
        %v536 = vld [vmem:[%s251 + $0x630] sm:$0xff]
        %v537 = vld [vmem:[%s251 + $0x638] sm:$0xff]
        %v538 = vld [vmem:[%s251 + $0x640] sm:$0xff]
        %v539 = vld [vmem:[%s251 + $0x648] sm:$0xff]
        %v540 = vld [vmem:[%s251 + $0x650] sm:$0xff]
        %v541 = vld [vmem:[%s251 + $0x658] sm:$0xff]
        %v542 = vld [vmem:[%s251 + $0x660] sm:$0xff]
        %v543 = vld [vmem:[%s251 + $0x668] sm:$0xff]
        %v544 = vld [vmem:[%s251 + $0x670] sm:$0xff]
        %v545 = vld [vmem:[%s251 + $0x678] sm:$0xff]
        %v546 = vld [vmem:[%s251 + $0x680] sm:$0xff]
        %v547 = vld [vmem:[%s251 + $0x688] sm:$0xff]
        %v548 = vld [vmem:[%s251 + $0x690] sm:$0xff]
        %v549 = vld [vmem:[%s251 + $0x698] sm:$0xff]
        %v550 = vld [vmem:[%s251 + $0x6a0] sm:$0xff]
        %v551 = vld [vmem:[%s251 + $0x6a8] sm:$0xff]
        %v552 = vld [vmem:[%s251 + $0x6b0] sm:$0xff]
        %v553 = vld [vmem:[%s251 + $0x6b8] sm:$0xff]
        %v554 = vld [vmem:[%s251 + $0x6c0] sm:$0xff]
        %v555 = vld [vmem:[%s251 + $0x6c8] sm:$0xff]
        %v556 = vld [vmem:[%s251 + $0x6d0] sm:$0xff]
        %v557 = vld [vmem:[%s251 + $0x6d8] sm:$0xff]
        %v558 = vld [vmem:[%s251 + $0x6e0] sm:$0xff]
        %v559 = vld [vmem:[%s251 + $0x6e8] sm:$0xff]
        %v560 = vld [vmem:[%s251 + $0x6f0] sm:$0xff]
        %v561 = vld [vmem:[%s251 + $0x6f8] sm:$0xff]
        %v562 = vld [vmem:[%s251 + $0x700] sm:$0xff]
        %v563 = vld [vmem:[%s251 + $0x708] sm:$0xff]
        %v564 = vld [vmem:[%s251 + $0x710] sm:$0xff]
        %v565 = vld [vmem:[%s251 + $0x718] sm:$0xff]
        %v566 = vld [vmem:[%s251 + $0x720] sm:$0xff]
        %v567 = vld [vmem:[%s251 + $0x728] sm:$0xff]
        %v568 = vld [vmem:[%s251 + $0x730] sm:$0xff]
        %v569 = vld [vmem:[%s251 + $0x738] sm:$0xff]
        %v570 = vld [vmem:[%s251 + $0x740] sm:$0xff]
        %v571 = vld [vmem:[%s251 + $0x748] sm:$0xff]
        %v572 = vld [vmem:[%s251 + $0x750] sm:$0xff]
        %v573 = vld [vmem:[%s251 + $0x758] sm:$0xff]
        %v574 = vld [vmem:[%s251 + $0x760] sm:$0xff]
        %v575 = vld [vmem:[%s251 + $0x768] sm:$0xff]
        %v576 = vld [vmem:[%s251 + $0x770] sm:$0xff]
        %v577 = vld [vmem:[%s251 + $0x778] sm:$0xff]
        %v578 = vld [vmem:[%s251 + $0x780] sm:$0xff]
        %v579 = vld [vmem:[%s251 + $0x788] sm:$0xff]
        %v580 = vld [vmem:[%s251 + $0x790] sm:$0xff]
        %v581 = vld [vmem:[%s251 + $0x798] sm:$0xff]
        %v582 = vld [vmem:[%s251 + $0x7a0] sm:$0xff]
        %v583 = vld [vmem:[%s251 + $0x7a8] sm:$0xff]
        %v584 = vld [vmem:[%s251 + $0x7b0] sm:$0xff]
        %v585 = vld [vmem:[%s251 + $0x7b8] sm:$0xff]
        %v586 = vld [vmem:[%s251 + $0x7c0] sm:$0xff]
        %v587 = vld [vmem:[%s251 + $0x7c8] sm:$0xff]
        %v588 = vld [vmem:[%s251 + $0x7d0] sm:$0xff]
        %v589 = vld [vmem:[%s251 + $0x7d8] sm:$0xff]
        %v590 = vld [vmem:[%s251 + $0x7e0] sm:$0xff]
        %v591 = vld [vmem:[%s251 + $0x7e8] sm:$0xff]
        %v592 = vld [vmem:[%s251 + $0x7f0] sm:$0xff]
        %v593 = vld [vmem:[%s251 + $0x7f8] sm:$0xff]
        %v594 = vld [vmem:[%s251 + $0x800] sm:$0xff]
        %v595 = vld [vmem:[%s251 + $0x808] sm:$0xff]
        %v596 = vld [vmem:[%s251 + $0x810] sm:$0xff]
        %v597 = vld [vmem:[%s251 + $0x818] sm:$0xff]
        %v598 = vld [vmem:[%s251 + $0x820] sm:$0xff]
        %v599 = vld [vmem:[%s251 + $0x828] sm:$0xff]
        %v600 = vld [vmem:[%s251 + $0x830] sm:$0xff]
        %v601 = vld [vmem:[%s251 + $0x838] sm:$0xff]
        %v602 = vld [vmem:[%s251 + $0x840] sm:$0xff]
        %v603 = vld [vmem:[%s251 + $0x848] sm:$0xff]
        %v604 = vld [vmem:[%s251 + $0x850] sm:$0xff]
        %v605 = vld [vmem:[%s251 + $0x858] sm:$0xff]
        %v606 = vld [vmem:[%s251 + $0x860] sm:$0xff]
        %v607 = vld [vmem:[%s251 + $0x868] sm:$0xff]
        %v608 = vld [vmem:[%s251 + $0x870] sm:$0xff]
        %v609 = vld [vmem:[%s251 + $0x878] sm:$0xff]
        %v610 = vld [vmem:[%s251 + $0x880] sm:$0xff]
        %v611 = vld [vmem:[%s251 + $0x888] sm:$0xff]
        %v612 = vld [vmem:[%s251 + $0x890] sm:$0xff]
        %v613 = vld [vmem:[%s251 + $0x898] sm:$0xff]
        %v614 = vld [vmem:[%s251 + $0x8a0] sm:$0xff]
        %v615 = vld [vmem:[%s251 + $0x8a8] sm:$0xff]
        %v616 = vld [vmem:[%s251 + $0x8b0] sm:$0xff]
        %v617 = vld [vmem:[%s251 + $0x8b8] sm:$0xff]
        %v618 = vld [vmem:[%s251 + $0x8c0] sm:$0xff]
        %v619 = vld [vmem:[%s251 + $0x8c8] sm:$0xff]
        %v620 = vld [vmem:[%s251 + $0x8d0] sm:$0xff]
        %v621 = vld [vmem:[%s251 + $0x8d8] sm:$0xff]
        %v622 = vld [vmem:[%s251 + $0x8e0] sm:$0xff]
        %v623 = vld [vmem:[%s251 + $0x8e8] sm:$0xff]
        %v624 = vld [vmem:[%s251 + $0x8f0] sm:$0xff]
        %v625 = vld [vmem:[%s251 + $0x8f8] sm:$0xff]
        %v626 = vld [vmem:[%s251 + $0x900] sm:$0xff]
        %v627 = vld [vmem:[%s251 + $0x908] sm:$0xff]
        %v628 = vld [vmem:[%s251 + $0x910] sm:$0xff]
        %v629 = vld [vmem:[%s251 + $0x918] sm:$0xff]
        %v630 = vld [vmem:[%s251 + $0x920] sm:$0xff]
        %v631 = vld [vmem:[%s251 + $0x928] sm:$0xff]
        %v632 = vld [vmem:[%s251 + $0x930] sm:$0xff]
        %v633 = vld [vmem:[%s251 + $0x938] sm:$0xff]
        %v634 = vld [vmem:[%s251 + $0x940] sm:$0xff]
        %v635 = vld [vmem:[%s251 + $0x948] sm:$0xff]
        %v636 = vld [vmem:[%s251 + $0x950] sm:$0xff]
        %v637 = vld [vmem:[%s251 + $0x958] sm:$0xff]
        %v638 = vld [vmem:[%s251 + $0x960] sm:$0xff]
        %v639 = vld [vmem:[%s251 + $0x968] sm:$0xff]
        %v640 = vld [vmem:[%s251 + $0x970] sm:$0xff]
        %v641 = vld [vmem:[%s251 + $0x978] sm:$0xff]
        %v642 = vld [vmem:[%s251 + $0x980] sm:$0xff]
        %v643 = vld [vmem:[%s251 + $0x988] sm:$0xff]
        %v644 = vld [vmem:[%s251 + $0x990] sm:$0xff]
        %v645 = vld [vmem:[%s251 + $0x998] sm:$0xff]
        %v646 = vld [vmem:[%s251 + $0x9a0] sm:$0xff]
        %v647 = vld [vmem:[%s251 + $0x9a8] sm:$0xff]
        %v648 = vld [vmem:[%s251 + $0x9b0] sm:$0xff]
        %v649 = vld [vmem:[%s251 + $0x9b8] sm:$0xff]
        %v650 = vld [vmem:[%s251 + $0x9c0] sm:$0xff]
        %v651 = vld [vmem:[%s251 + $0x9c8] sm:$0xff]
        %v652 = vld [vmem:[%s251 + $0x9d0] sm:$0xff]
        %v653 = vld [vmem:[%s251 + $0x9d8] sm:$0xff]
        %v654 = vld [vmem:[%s251 + $0x9e0] sm:$0xff]
        %v655 = vld [vmem:[%s251 + $0x9e8] sm:$0xff]
        %v656 = vld [vmem:[%s251 + $0x9f0] sm:$0xff]
        %v657 = vld [vmem:[%s251 + $0x9f8] sm:$0xff]
        %v658 = vld [vmem:[%s251 + $0xa00] sm:$0xff]
        %v659 = vld [vmem:[%s251 + $0xa08] sm:$0xff]
        %v660 = vld [vmem:[%s251 + $0xa10] sm:$0xff]
        %v661 = vld [vmem:[%s251 + $0xa18] sm:$0xff]
        %v662 = vld [vmem:[%s251 + $0xa20] sm:$0xff]
        %v663 = vld [vmem:[%s251 + $0xa28] sm:$0xff]
        %v664 = vld [vmem:[%s251 + $0xa30] sm:$0xff]
        %v665 = vld [vmem:[%s251 + $0xa38] sm:$0xff]
        %v666 = vld [vmem:[%s251 + $0xa40] sm:$0xff]
        %v667 = vld [vmem:[%s251 + $0xa48] sm:$0xff]
        %v668 = vld [vmem:[%s251 + $0xa50] sm:$0xff]
        %v669 = vld [vmem:[%s251 + $0xa58] sm:$0xff]
        %v670 = vld [vmem:[%s251 + $0xa60] sm:$0xff]
        %v671 = vld [vmem:[%s251 + $0xa68] sm:$0xff]
        %v672 = vld [vmem:[%s251 + $0xa70] sm:$0xff]
        %v673 = vld [vmem:[%s251 + $0xa78] sm:$0xff]
        %v674 = vld [vmem:[%s251 + $0xa80] sm:$0xff]
        %v675 = vld [vmem:[%s251 + $0xa88] sm:$0xff]
        %v676 = vld [vmem:[%s251 + $0xa90] sm:$0xff]
        %v677 = vld [vmem:[%s251 + $0xa98] sm:$0xff]
        %v678 = vld [vmem:[%s251 + $0xaa0] sm:$0xff]
        %v679 = vld [vmem:[%s251 + $0xaa8] sm:$0xff]
        %v680 = vld [vmem:[%s251 + $0xab0] sm:$0xff]
        %v681 = vld [vmem:[%s251 + $0xab8] sm:$0xff]
        %v682 = vld [vmem:[%s251 + $0xac0] sm:$0xff]
        %v683 = vld [vmem:[%s251 + $0xac8] sm:$0xff]
        %v684 = vld [vmem:[%s251 + $0xad0] sm:$0xff]
        %v685 = vld [vmem:[%s251 + $0xad8] sm:$0xff]
        %v686 = vld [vmem:[%s251 + $0xae0] sm:$0xff]
        %v687 = vld [vmem:[%s251 + $0xae8] sm:$0xff]
        %v688 = vld [vmem:[%s251 + $0xaf0] sm:$0xff]
        %v689 = vld [vmem:[%s251 + $0xaf8] sm:$0xff]
        %v690 = vld [vmem:[%s251 + $0xb00] sm:$0xff]
        %v691 = vld [vmem:[%s251 + $0xb08] sm:$0xff]
        %v692 = vld [vmem:[%s251 + $0xb10] sm:$0xff]
        %v693 = vld [vmem:[%s251 + $0xb18] sm:$0xff]
        %v694 = vld [vmem:[%s251 + $0xb20] sm:$0xff]
        %v695 = vld [vmem:[%s251 + $0xb28] sm:$0xff]
        %v696 = vld [vmem:[%s251 + $0xb30] sm:$0xff]
        %v697 = vld [vmem:[%s251 + $0xb38] sm:$0xff]
        %v698 = vld [vmem:[%s251 + $0xb40] sm:$0xff]
        %v699 = vld [vmem:[%s251 + $0xb48] sm:$0xff]
        %v700 = vld [vmem:[%s251 + $0xb50] sm:$0xff]
        %v701 = vld [vmem:[%s251 + $0xb58] sm:$0xff]
        %v702 = vld [vmem:[%s251 + $0xb60] sm:$0xff]
        %v703 = vld [vmem:[%s251 + $0xb68] sm:$0xff]
        %v704 = vld [vmem:[%s251 + $0xb70] sm:$0xff]
        %v705 = vld [vmem:[%s251 + $0xb78] sm:$0xff]
        %v706 = vld [vmem:[%s251 + $0xb80] sm:$0xff]
        %v707 = vld [vmem:[%s251 + $0xb88] sm:$0xff]
        %v708 = vld [vmem:[%s251 + $0xb90] sm:$0xff]
        %v709 = vld [vmem:[%s251 + $0xb98] sm:$0xff]
        %v710 = vld [vmem:[%s251 + $0xba0] sm:$0xff]
        %v711 = vld [vmem:[%s251 + $0xba8] sm:$0xff]
        %v712 = vld [vmem:[%s251 + $0xbb0] sm:$0xff]
        %v713 = vld [vmem:[%s251 + $0xbb8] sm:$0xff]
        %v714 = vld [vmem:[%s251 + $0xbc0] sm:$0xff]
        %v715 = vld [vmem:[%s251 + $0xbc8] sm:$0xff]
        %v716 = vld [vmem:[%s251 + $0xbd0] sm:$0xff]
        %v717 = vld [vmem:[%s251 + $0xbd8] sm:$0xff]
        %v718 = vld [vmem:[%s251 + $0xbe0] sm:$0xff]
        %v719 = vld [vmem:[%s251 + $0xbe8] sm:$0xff]
        %v720 = vld [vmem:[%s251 + $0xbf0] sm:$0xff]
        %v721 = vld [vmem:[%s251 + $0xbf8] sm:$0xff]
        %v734 = vunpack.c.l.b16 %v326
        %v735 = vunpack.c.h.b16 %v326
        %v736 = vunpack.c.l.b16 %v327
        %v737 = vunpack.c.h.b16 %v327
        %v738 = vunpack.c.l.b16 %v328
        %v739 = vunpack.c.h.b16 %v328
        %v740 = vunpack.c.l.b16 %v329
        %v741 = vunpack.c.h.b16 %v329
        %v742 = vunpack.c.l.b16 %v330
        %v743 = vunpack.c.h.b16 %v330
        %v744 = vunpack.c.l.b16 %v331
        %v745 = vunpack.c.h.b16 %v331
        %v746 = vunpack.c.l.b16 %v332
        %v747 = vunpack.c.h.b16 %v332
        %v748 = vunpack.c.l.b16 %v333
        %v749 = vunpack.c.h.b16 %v333
        %v750 = vunpack.c.l.b16 %v334
        %v751 = vunpack.c.h.b16 %v334
        %v752 = vunpack.c.l.b16 %v335
        %v753 = vunpack.c.h.b16 %v335
        %v754 = vunpack.c.l.b16 %v336
        %v755 = vunpack.c.h.b16 %v336
        %v756 = vunpack.c.l.b16 %v337
        %v757 = vunpack.c.h.b16 %v337
        %v758 = vpack.c.b16 %v734, %v734
        %v759 = vpack.c.b16 %v735, %v735
        %v760 = vpack.c.b16 %v736, %v736
        %v761 = vpack.c.b16 %v737, %v737
        %v762 = vpack.c.b16 %v738, %v738
        %v763 = vpack.c.b16 %v739, %v739
        %v764 = vpack.c.b16 %v740, %v740
        %v765 = vpack.c.b16 %v741, %v741
        %v766 = vpack.c.b16 %v742, %v742
        %v767 = vpack.c.b16 %v743, %v743
        %v768 = vpack.c.b16 %v744, %v744
        %v769 = vpack.c.b16 %v745, %v745
        %v770 = vpack.c.b16 %v746, %v746
        %v771 = vpack.c.b16 %v747, %v747
        %v772 = vpack.c.b16 %v748, %v748
        %v773 = vpack.c.b16 %v749, %v749
        %v774 = vpack.c.b16 %v750, %v750
        %v775 = vpack.c.b16 %v751, %v751
        %v776 = vpack.c.b16 %v752, %v752
        %v777 = vpack.c.b16 %v753, %v753
        %v778 = vpack.c.b16 %v754, %v754
        %v779 = vpack.c.b16 %v755, %v755
        %v780 = vpack.c.b16 %v756, %v756
        %v781 = vpack.c.b16 %v757, %v757
        %v1190 = vunpack.c.l.b16 %v338
        %v1191 = vunpack.c.h.b16 %v338
        %v1192 = vunpack.c.l.b16 %v339
        %v1193 = vunpack.c.h.b16 %v339
        %v1194 = vunpack.c.l.b16 %v340
        %v1195 = vunpack.c.h.b16 %v340
        %v1196 = vunpack.c.l.b16 %v341
        %v1197 = vunpack.c.h.b16 %v341
        %v1198 = vunpack.c.l.b16 %v342
        %v1199 = vunpack.c.h.b16 %v342
        %v1200 = vunpack.c.l.b16 %v343
        %v1201 = vunpack.c.h.b16 %v343
        %v1202 = vunpack.c.l.b16 %v344
        %v1203 = vunpack.c.h.b16 %v344
        %v1204 = vunpack.c.l.b16 %v345
        %v1205 = vunpack.c.h.b16 %v345
        %v1206 = vunpack.c.l.b16 %v346
        %v1207 = vunpack.c.h.b16 %v346
        %v1208 = vunpack.c.l.b16 %v347
        %v1209 = vunpack.c.h.b16 %v347
        %v1210 = vunpack.c.l.b16 %v348
        %v1211 = vunpack.c.h.b16 %v348
        %v1212 = vunpack.c.l.b16 %v349
        %v1213 = vunpack.c.h.b16 %v349
        %v1214 = vunpack.c.l.b16 %v350
        %v1215 = vunpack.c.h.b16 %v350
        %v1216 = vunpack.c.l.b16 %v351
        %v1217 = vunpack.c.h.b16 %v351
        %v1218 = vunpack.c.l.b16 %v352
        %v1219 = vunpack.c.h.b16 %v352
        %v1220 = vunpack.c.l.b16 %v353
        %v1221 = vunpack.c.h.b16 %v353
        %v1222 = vunpack.c.l.b16 %v354
        %v1223 = vunpack.c.h.b16 %v354
        %v1224 = vunpack.c.l.b16 %v355
        %v1225 = vunpack.c.h.b16 %v355
        %v1226 = vunpack.c.l.b16 %v356
        %v1227 = vunpack.c.h.b16 %v356
        %v1228 = vunpack.c.l.b16 %v357
        %v1229 = vunpack.c.h.b16 %v357
        %v1230 = vunpack.c.l.b16 %v358
        %v1231 = vunpack.c.h.b16 %v358
        %v1232 = vunpack.c.l.b16 %v359
        %v1233 = vunpack.c.h.b16 %v359
        %v1234 = vunpack.c.l.b16 %v360
        %v1235 = vunpack.c.h.b16 %v360
        %v1236 = vunpack.c.l.b16 %v361
        %v1237 = vunpack.c.h.b16 %v361
        %v1238 = vunpack.c.l.b16 %v362
        %v1239 = vunpack.c.h.b16 %v362
        %v1240 = vunpack.c.l.b16 %v363
        %v1241 = vunpack.c.h.b16 %v363
        %v1242 = vunpack.c.l.b16 %v364
        %v1243 = vunpack.c.h.b16 %v364
        %v1244 = vunpack.c.l.b16 %v365
        %v1245 = vunpack.c.h.b16 %v365
        %v1246 = vunpack.c.l.b16 %v366
        %v1247 = vunpack.c.h.b16 %v366
        %v1248 = vunpack.c.l.b16 %v367
        %v1249 = vunpack.c.h.b16 %v367
        %v1250 = vunpack.c.l.b16 %v368
        %v1251 = vunpack.c.h.b16 %v368
        %v1252 = vunpack.c.l.b16 %v369
        %v1253 = vunpack.c.h.b16 %v369
        %v1254 = vunpack.c.l.b16 %v370
        %v1255 = vunpack.c.h.b16 %v370
        %v1256 = vunpack.c.l.b16 %v371
        %v1257 = vunpack.c.h.b16 %v371
        %v1258 = vunpack.c.l.b16 %v372
        %v1259 = vunpack.c.h.b16 %v372
        %v1260 = vunpack.c.l.b16 %v373
        %v1261 = vunpack.c.h.b16 %v373
        %v1262 = vunpack.c.l.b16 %v374
        %v1263 = vunpack.c.h.b16 %v374
        %v1264 = vunpack.c.l.b16 %v375
        %v1265 = vunpack.c.h.b16 %v375
        %v1266 = vunpack.c.l.b16 %v376
        %v1267 = vunpack.c.h.b16 %v376
        %v1268 = vunpack.c.l.b16 %v377
        %v1269 = vunpack.c.h.b16 %v377
        %v1270 = vunpack.c.l.b16 %v378
        %v1271 = vunpack.c.h.b16 %v378
        %v1272 = vunpack.c.l.b16 %v379
        %v1273 = vunpack.c.h.b16 %v379
        %v1274 = vunpack.c.l.b16 %v380
        %v1275 = vunpack.c.h.b16 %v380
        %v1276 = vunpack.c.l.b16 %v381
        %v1277 = vunpack.c.h.b16 %v381
        %v1278 = vunpack.c.l.b16 %v382
        %v1279 = vunpack.c.h.b16 %v382
        %v1280 = vunpack.c.l.b16 %v383
        %v1281 = vunpack.c.h.b16 %v383
        %v1282 = vunpack.c.l.b16 %v384
        %v1283 = vunpack.c.h.b16 %v384
        %v1284 = vunpack.c.l.b16 %v385
        %v1285 = vunpack.c.h.b16 %v385
        %v1286 = vunpack.c.l.b16 %v386
        %v1287 = vunpack.c.h.b16 %v386
        %v1288 = vunpack.c.l.b16 %v387
        %v1289 = vunpack.c.h.b16 %v387
        %v1290 = vunpack.c.l.b16 %v388
        %v1291 = vunpack.c.h.b16 %v388
        %v1292 = vunpack.c.l.b16 %v389
        %v1293 = vunpack.c.h.b16 %v389
        %v1294 = vunpack.c.l.b16 %v390
        %v1295 = vunpack.c.h.b16 %v390
        %v1296 = vunpack.c.l.b16 %v391
        %v1297 = vunpack.c.h.b16 %v391
        %v1298 = vunpack.c.l.b16 %v392
        %v1299 = vunpack.c.h.b16 %v392
        %v1300 = vunpack.c.l.b16 %v393
        %v1301 = vunpack.c.h.b16 %v393
        %v1302 = vunpack.c.l.b16 %v394
        %v1303 = vunpack.c.h.b16 %v394
        %v1304 = vunpack.c.l.b16 %v395
        %v1305 = vunpack.c.h.b16 %v395
        %v1306 = vunpack.c.l.b16 %v396
        %v1307 = vunpack.c.h.b16 %v396
        %v1308 = vunpack.c.l.b16 %v397
        %v1309 = vunpack.c.h.b16 %v397
        %v1310 = vunpack.c.l.b16 %v398
        %v1311 = vunpack.c.h.b16 %v398
        %v1312 = vunpack.c.l.b16 %v399
        %v1313 = vunpack.c.h.b16 %v399
        %v1314 = vunpack.c.l.b16 %v400
        %v1315 = vunpack.c.h.b16 %v400
        %v1316 = vunpack.c.l.b16 %v401
        %v1317 = vunpack.c.h.b16 %v401
        %v1318 = vunpack.c.l.b16 %v402
        %v1319 = vunpack.c.h.b16 %v402
        %v1320 = vunpack.c.l.b16 %v403
        %v1321 = vunpack.c.h.b16 %v403
        %v1322 = vunpack.c.l.b16 %v404
        %v1323 = vunpack.c.h.b16 %v404
        %v1324 = vunpack.c.l.b16 %v405
        %v1325 = vunpack.c.h.b16 %v405
        %v1326 = vunpack.c.l.b16 %v406
        %v1327 = vunpack.c.h.b16 %v406
        %v1328 = vunpack.c.l.b16 %v407
        %v1329 = vunpack.c.h.b16 %v407
        %v1330 = vunpack.c.l.b16 %v408
        %v1331 = vunpack.c.h.b16 %v408
        %v1332 = vunpack.c.l.b16 %v409
        %v1333 = vunpack.c.h.b16 %v409
        %v1334 = vunpack.c.l.b16 %v410
        %v1335 = vunpack.c.h.b16 %v410
        %v1336 = vunpack.c.l.b16 %v411
        %v1337 = vunpack.c.h.b16 %v411
        %v1338 = vunpack.c.l.b16 %v412
        %v1339 = vunpack.c.h.b16 %v412
        %v1340 = vunpack.c.l.b16 %v413
        %v1341 = vunpack.c.h.b16 %v413
        %v1342 = vunpack.c.l.b16 %v414
        %v1343 = vunpack.c.h.b16 %v414
        %v1344 = vunpack.c.l.b16 %v415
        %v1345 = vunpack.c.h.b16 %v415
        %v1346 = vunpack.c.l.b16 %v416
        %v1347 = vunpack.c.h.b16 %v416
        %v1348 = vunpack.c.l.b16 %v417
        %v1349 = vunpack.c.h.b16 %v417
        %v1350 = vunpack.c.l.b16 %v418
        %v1351 = vunpack.c.h.b16 %v418
        %v1352 = vunpack.c.l.b16 %v419
        %v1353 = vunpack.c.h.b16 %v419
        %v1354 = vunpack.c.l.b16 %v420
        %v1355 = vunpack.c.h.b16 %v420
        %v1356 = vunpack.c.l.b16 %v421
        %v1357 = vunpack.c.h.b16 %v421
        %v1358 = vunpack.c.l.b16 %v422
        %v1359 = vunpack.c.h.b16 %v422
        %v1360 = vunpack.c.l.b16 %v423
        %v1361 = vunpack.c.h.b16 %v423
        %v1362 = vunpack.c.l.b16 %v424
        %v1363 = vunpack.c.h.b16 %v424
        %v1364 = vunpack.c.l.b16 %v425
        %v1365 = vunpack.c.h.b16 %v425
        %v1366 = vunpack.c.l.b16 %v426
        %v1367 = vunpack.c.h.b16 %v426
        %v1368 = vunpack.c.l.b16 %v427
        %v1369 = vunpack.c.h.b16 %v427
        %v1370 = vunpack.c.l.b16 %v428
        %v1371 = vunpack.c.h.b16 %v428
        %v1372 = vunpack.c.l.b16 %v429
        %v1373 = vunpack.c.h.b16 %v429
        %v1374 = vunpack.c.l.b16 %v430
        %v1375 = vunpack.c.h.b16 %v430
        %v1376 = vunpack.c.l.b16 %v431
        %v1377 = vunpack.c.h.b16 %v431
        %v1378 = vunpack.c.l.b16 %v432
        %v1379 = vunpack.c.h.b16 %v432
        %v1380 = vunpack.c.l.b16 %v433
        %v1381 = vunpack.c.h.b16 %v433
        %v1382 = vunpack.c.l.b16 %v434
        %v1383 = vunpack.c.h.b16 %v434
        %v1384 = vunpack.c.l.b16 %v435
        %v1385 = vunpack.c.h.b16 %v435
        %v1386 = vunpack.c.l.b16 %v436
        %v1387 = vunpack.c.h.b16 %v436
        %v1388 = vunpack.c.l.b16 %v437
        %v1389 = vunpack.c.h.b16 %v437
        %v1390 = vunpack.c.l.b16 %v438
        %v1391 = vunpack.c.h.b16 %v438
        %v1392 = vunpack.c.l.b16 %v439
        %v1393 = vunpack.c.h.b16 %v439
        %v1394 = vunpack.c.l.b16 %v440
        %v1395 = vunpack.c.h.b16 %v440
        %v1396 = vunpack.c.l.b16 %v441
        %v1397 = vunpack.c.h.b16 %v441
        %v1398 = vunpack.c.l.b16 %v442
        %v1399 = vunpack.c.h.b16 %v442
        %v1400 = vunpack.c.l.b16 %v443
        %v1401 = vunpack.c.h.b16 %v443
        %v1402 = vunpack.c.l.b16 %v444
        %v1403 = vunpack.c.h.b16 %v444
        %v1404 = vunpack.c.l.b16 %v445
        %v1405 = vunpack.c.h.b16 %v445
        %v1406 = vunpack.c.l.b16 %v446
        %v1407 = vunpack.c.h.b16 %v446
        %v1408 = vunpack.c.l.b16 %v447
        %v1409 = vunpack.c.h.b16 %v447
        %v1410 = vunpack.c.l.b16 %v448
        %v1411 = vunpack.c.h.b16 %v448
        %v1412 = vunpack.c.l.b16 %v449
        %v1413 = vunpack.c.h.b16 %v449
        %v1414 = vunpack.c.l.b16 %v450
        %v1415 = vunpack.c.h.b16 %v450
        %v1416 = vunpack.c.l.b16 %v451
        %v1417 = vunpack.c.h.b16 %v451
        %v1418 = vunpack.c.l.b16 %v452
        %v1419 = vunpack.c.h.b16 %v452
        %v1420 = vunpack.c.l.b16 %v453
        %v1421 = vunpack.c.h.b16 %v453
        %v1422 = vunpack.c.l.b16 %v454
        %v1423 = vunpack.c.h.b16 %v454
        %v1424 = vunpack.c.l.b16 %v455
        %v1425 = vunpack.c.h.b16 %v455
        %v1426 = vunpack.c.l.b16 %v456
        %v1427 = vunpack.c.h.b16 %v456
        %v1428 = vunpack.c.l.b16 %v457
        %v1429 = vunpack.c.h.b16 %v457
        %v1430 = vunpack.c.l.b16 %v458
        %v1431 = vunpack.c.h.b16 %v458
        %v1432 = vunpack.c.l.b16 %v459
        %v1433 = vunpack.c.h.b16 %v459
        %v1434 = vunpack.c.l.b16 %v460
        %v1435 = vunpack.c.h.b16 %v460
        %v1436 = vunpack.c.l.b16 %v461
        %v1437 = vunpack.c.h.b16 %v461
        %v1438 = vunpack.c.l.b16 %v462
        %v1439 = vunpack.c.h.b16 %v462
        %v1440 = vunpack.c.l.b16 %v463
        %v1441 = vunpack.c.h.b16 %v463
        %v1442 = vunpack.c.l.b16 %v464
        %v1443 = vunpack.c.h.b16 %v464
        %v1444 = vunpack.c.l.b16 %v465
        %v1445 = vunpack.c.h.b16 %v465
        %v1446 = vunpack.c.l.b16 %v466
        %v1447 = vunpack.c.h.b16 %v466
        %v1448 = vunpack.c.l.b16 %v467
        %v1449 = vunpack.c.h.b16 %v467
        %v1450 = vunpack.c.l.b16 %v468
        %v1451 = vunpack.c.h.b16 %v468
        %v1452 = vunpack.c.l.b16 %v469
        %v1453 = vunpack.c.h.b16 %v469
        %v1454 = vunpack.c.l.b16 %v470
        %v1455 = vunpack.c.h.b16 %v470
        %v1456 = vunpack.c.l.b16 %v471
        %v1457 = vunpack.c.h.b16 %v471
        %v1458 = vunpack.c.l.b16 %v472
        %v1459 = vunpack.c.h.b16 %v472
        %v1460 = vunpack.c.l.b16 %v473
        %v1461 = vunpack.c.h.b16 %v473
        %v1462 = vunpack.c.l.b16 %v474
        %v1463 = vunpack.c.h.b16 %v474
        %v1464 = vunpack.c.l.b16 %v475
        %v1465 = vunpack.c.h.b16 %v475
        %v1466 = vunpack.c.l.b16 %v476
        %v1467 = vunpack.c.h.b16 %v476
        %v1468 = vunpack.c.l.b16 %v477
        %v1469 = vunpack.c.h.b16 %v477
        %v1470 = vunpack.c.l.b16 %v478
        %v1471 = vunpack.c.h.b16 %v478
        %v1472 = vunpack.c.l.b16 %v479
        %v1473 = vunpack.c.h.b16 %v479
        %v1474 = vunpack.c.l.b16 %v480
        %v1475 = vunpack.c.h.b16 %v480
        %v1476 = vunpack.c.l.b16 %v481
        %v1477 = vunpack.c.h.b16 %v481
        %v1478 = vunpack.c.l.b16 %v482
        %v1479 = vunpack.c.h.b16 %v482
        %v1480 = vunpack.c.l.b16 %v483
        %v1481 = vunpack.c.h.b16 %v483
        %v1482 = vunpack.c.l.b16 %v484
        %v1483 = vunpack.c.h.b16 %v484
        %v1484 = vunpack.c.l.b16 %v485
        %v1485 = vunpack.c.h.b16 %v485
        %v1486 = vunpack.c.l.b16 %v486
        %v1487 = vunpack.c.h.b16 %v486
        %v1488 = vunpack.c.l.b16 %v487
        %v1489 = vunpack.c.h.b16 %v487
        %v1490 = vunpack.c.l.b16 %v488
        %v1491 = vunpack.c.h.b16 %v488
        %v1492 = vunpack.c.l.b16 %v489
        %v1493 = vunpack.c.h.b16 %v489
        %v1494 = vunpack.c.l.b16 %v490
        %v1495 = vunpack.c.h.b16 %v490
        %v1496 = vunpack.c.l.b16 %v491
        %v1497 = vunpack.c.h.b16 %v491
        %v1498 = vunpack.c.l.b16 %v492
        %v1499 = vunpack.c.h.b16 %v492
        %v1500 = vunpack.c.l.b16 %v493
        %v1501 = vunpack.c.h.b16 %v493
        %v1502 = vunpack.c.l.b16 %v494
        %v1503 = vunpack.c.h.b16 %v494
        %v1504 = vunpack.c.l.b16 %v495
        %v1505 = vunpack.c.h.b16 %v495
        %v1506 = vunpack.c.l.b16 %v496
        %v1507 = vunpack.c.h.b16 %v496
        %v1508 = vunpack.c.l.b16 %v497
        %v1509 = vunpack.c.h.b16 %v497
        %v1510 = vunpack.c.l.b16 %v498
        %v1511 = vunpack.c.h.b16 %v498
        %v1512 = vunpack.c.l.b16 %v499
        %v1513 = vunpack.c.h.b16 %v499
        %v1514 = vunpack.c.l.b16 %v500
        %v1515 = vunpack.c.h.b16 %v500
        %v1516 = vunpack.c.l.b16 %v501
        %v1517 = vunpack.c.h.b16 %v501
        %v1518 = vunpack.c.l.b16 %v502
        %v1519 = vunpack.c.h.b16 %v502
        %v1520 = vunpack.c.l.b16 %v503
        %v1521 = vunpack.c.h.b16 %v503
        %v1522 = vunpack.c.l.b16 %v504
        %v1523 = vunpack.c.h.b16 %v504
        %v1524 = vunpack.c.l.b16 %v505
        %v1525 = vunpack.c.h.b16 %v505
        %v1526 = vunpack.c.l.b16 %v506
        %v1527 = vunpack.c.h.b16 %v506
        %v1528 = vunpack.c.l.b16 %v507
        %v1529 = vunpack.c.h.b16 %v507
        %v1530 = vunpack.c.l.b16 %v508
        %v1531 = vunpack.c.h.b16 %v508
        %v1532 = vunpack.c.l.b16 %v509
        %v1533 = vunpack.c.h.b16 %v509
        %v1534 = vunpack.c.l.b16 %v510
        %v1535 = vunpack.c.h.b16 %v510
        %v1536 = vunpack.c.l.b16 %v511
        %v1537 = vunpack.c.h.b16 %v511
        %v1538 = vunpack.c.l.b16 %v512
        %v1539 = vunpack.c.h.b16 %v512
        %v1540 = vunpack.c.l.b16 %v513
        %v1541 = vunpack.c.h.b16 %v513
        %v1542 = vunpack.c.l.b16 %v514
        %v1543 = vunpack.c.h.b16 %v514
        %v1544 = vunpack.c.l.b16 %v515
        %v1545 = vunpack.c.h.b16 %v515
        %v1546 = vunpack.c.l.b16 %v516
        %v1547 = vunpack.c.h.b16 %v516
        %v1548 = vunpack.c.l.b16 %v517
        %v1549 = vunpack.c.h.b16 %v517
        %v1550 = vunpack.c.l.b16 %v518
        %v1551 = vunpack.c.h.b16 %v518
        %v1552 = vunpack.c.l.b16 %v519
        %v1553 = vunpack.c.h.b16 %v519
        %v1554 = vunpack.c.l.b16 %v520
        %v1555 = vunpack.c.h.b16 %v520
        %v1556 = vunpack.c.l.b16 %v521
        %v1557 = vunpack.c.h.b16 %v521
        %v1558 = vunpack.c.l.b16 %v522
        %v1559 = vunpack.c.h.b16 %v522
        %v1560 = vunpack.c.l.b16 %v523
        %v1561 = vunpack.c.h.b16 %v523
        %v1562 = vunpack.c.l.b16 %v524
        %v1563 = vunpack.c.h.b16 %v524
        %v1564 = vunpack.c.l.b16 %v525
        %v1565 = vunpack.c.h.b16 %v525
        %v1566 = vunpack.c.l.b16 %v526
        %v1567 = vunpack.c.h.b16 %v526
        %v1568 = vunpack.c.l.b16 %v527
        %v1569 = vunpack.c.h.b16 %v527
        %v1570 = vunpack.c.l.b16 %v528
        %v1571 = vunpack.c.h.b16 %v528
        %v1572 = vunpack.c.l.b16 %v529
        %v1573 = vunpack.c.h.b16 %v529
        %v1574 = vunpack.c.l.b16 %v530
        %v1575 = vunpack.c.h.b16 %v530
        %v1576 = vunpack.c.l.b16 %v531
        %v1577 = vunpack.c.h.b16 %v531
        %v1578 = vunpack.c.l.b16 %v532
        %v1579 = vunpack.c.h.b16 %v532
        %v1580 = vunpack.c.l.b16 %v533
        %v1581 = vunpack.c.h.b16 %v533
        %v1582 = vunpack.c.l.b16 %v534
        %v1583 = vunpack.c.h.b16 %v534
        %v1584 = vunpack.c.l.b16 %v535
        %v1585 = vunpack.c.h.b16 %v535
        %v1586 = vunpack.c.l.b16 %v536
        %v1587 = vunpack.c.h.b16 %v536
        %v1588 = vunpack.c.l.b16 %v537
        %v1589 = vunpack.c.h.b16 %v537
        %v1590 = vunpack.c.l.b16 %v538
        %v1591 = vunpack.c.h.b16 %v538
        %v1592 = vunpack.c.l.b16 %v539
        %v1593 = vunpack.c.h.b16 %v539
        %v1594 = vunpack.c.l.b16 %v540
        %v1595 = vunpack.c.h.b16 %v540
        %v1596 = vunpack.c.l.b16 %v541
        %v1597 = vunpack.c.h.b16 %v541
        %v1598 = vunpack.c.l.b16 %v542
        %v1599 = vunpack.c.h.b16 %v542
        %v1600 = vunpack.c.l.b16 %v543
        %v1601 = vunpack.c.h.b16 %v543
        %v1602 = vunpack.c.l.b16 %v544
        %v1603 = vunpack.c.h.b16 %v544
        %v1604 = vunpack.c.l.b16 %v545
        %v1605 = vunpack.c.h.b16 %v545
        %v1606 = vunpack.c.l.b16 %v546
        %v1607 = vunpack.c.h.b16 %v546
        %v1608 = vunpack.c.l.b16 %v547
        %v1609 = vunpack.c.h.b16 %v547
        %v1610 = vunpack.c.l.b16 %v548
        %v1611 = vunpack.c.h.b16 %v548
        %v1612 = vunpack.c.l.b16 %v549
        %v1613 = vunpack.c.h.b16 %v549
        %v1614 = vunpack.c.l.b16 %v550
        %v1615 = vunpack.c.h.b16 %v550
        %v1616 = vunpack.c.l.b16 %v551
        %v1617 = vunpack.c.h.b16 %v551
        %v1618 = vunpack.c.l.b16 %v552
        %v1619 = vunpack.c.h.b16 %v552
        %v1620 = vunpack.c.l.b16 %v553
        %v1621 = vunpack.c.h.b16 %v553
        %v1622 = vunpack.c.l.b16 %v554
        %v1623 = vunpack.c.h.b16 %v554
        %v1624 = vunpack.c.l.b16 %v555
        %v1625 = vunpack.c.h.b16 %v555
        %v1626 = vunpack.c.l.b16 %v556
        %v1627 = vunpack.c.h.b16 %v556
        %v1628 = vunpack.c.l.b16 %v557
        %v1629 = vunpack.c.h.b16 %v557
        %v1630 = vunpack.c.l.b16 %v558
        %v1631 = vunpack.c.h.b16 %v558
        %v1632 = vunpack.c.l.b16 %v559
        %v1633 = vunpack.c.h.b16 %v559
        %v1634 = vunpack.c.l.b16 %v560
        %v1635 = vunpack.c.h.b16 %v560
        %v1636 = vunpack.c.l.b16 %v561
        %v1637 = vunpack.c.h.b16 %v561
        %v1638 = vunpack.c.l.b16 %v562
        %v1639 = vunpack.c.h.b16 %v562
        %v1640 = vunpack.c.l.b16 %v563
        %v1641 = vunpack.c.h.b16 %v563
        %v1642 = vunpack.c.l.b16 %v564
        %v1643 = vunpack.c.h.b16 %v564
        %v1644 = vunpack.c.l.b16 %v565
        %v1645 = vunpack.c.h.b16 %v565
        %v1646 = vunpack.c.l.b16 %v566
        %v1647 = vunpack.c.h.b16 %v566
        %v1648 = vunpack.c.l.b16 %v567
        %v1649 = vunpack.c.h.b16 %v567
        %v1650 = vunpack.c.l.b16 %v568
        %v1651 = vunpack.c.h.b16 %v568
        %v1652 = vunpack.c.l.b16 %v569
        %v1653 = vunpack.c.h.b16 %v569
        %v1654 = vunpack.c.l.b16 %v570
        %v1655 = vunpack.c.h.b16 %v570
        %v1656 = vunpack.c.l.b16 %v571
        %v1657 = vunpack.c.h.b16 %v571
        %v1658 = vunpack.c.l.b16 %v572
        %v1659 = vunpack.c.h.b16 %v572
        %v1660 = vunpack.c.l.b16 %v573
        %v1661 = vunpack.c.h.b16 %v573
        %v1662 = vunpack.c.l.b16 %v574
        %v1663 = vunpack.c.h.b16 %v574
        %v1664 = vunpack.c.l.b16 %v575
        %v1665 = vunpack.c.h.b16 %v575
        %v1666 = vunpack.c.l.b16 %v576
        %v1667 = vunpack.c.h.b16 %v576
        %v1668 = vunpack.c.l.b16 %v577
        %v1669 = vunpack.c.h.b16 %v577
        %v1670 = vunpack.c.l.b16 %v578
        %v1671 = vunpack.c.h.b16 %v578
        %v1672 = vunpack.c.l.b16 %v579
        %v1673 = vunpack.c.h.b16 %v579
        %v1674 = vunpack.c.l.b16 %v580
        %v1675 = vunpack.c.h.b16 %v580
        %v1676 = vunpack.c.l.b16 %v581
        %v1677 = vunpack.c.h.b16 %v581
        %v1678 = vunpack.c.l.b16 %v582
        %v1679 = vunpack.c.h.b16 %v582
        %v1680 = vunpack.c.l.b16 %v583
        %v1681 = vunpack.c.h.b16 %v583
        %v1682 = vunpack.c.l.b16 %v584
        %v1683 = vunpack.c.h.b16 %v584
        %v1684 = vunpack.c.l.b16 %v585
        %v1685 = vunpack.c.h.b16 %v585
        %v1686 = vunpack.c.l.b16 %v586
        %v1687 = vunpack.c.h.b16 %v586
        %v1688 = vunpack.c.l.b16 %v587
        %v1689 = vunpack.c.h.b16 %v587
        %v1690 = vunpack.c.l.b16 %v588
        %v1691 = vunpack.c.h.b16 %v588
        %v1692 = vunpack.c.l.b16 %v589
        %v1693 = vunpack.c.h.b16 %v589
        %v1694 = vunpack.c.l.b16 %v590
        %v1695 = vunpack.c.h.b16 %v590
        %v1696 = vunpack.c.l.b16 %v591
        %v1697 = vunpack.c.h.b16 %v591
        %v1698 = vunpack.c.l.b16 %v592
        %v1699 = vunpack.c.h.b16 %v592
        %v1700 = vunpack.c.l.b16 %v593
        %v1701 = vunpack.c.h.b16 %v593
        %v1702 = vunpack.c.l.b16 %v594
        %v1703 = vunpack.c.h.b16 %v594
        %v1704 = vunpack.c.l.b16 %v595
        %v1705 = vunpack.c.h.b16 %v595
        %v1706 = vunpack.c.l.b16 %v596
        %v1707 = vunpack.c.h.b16 %v596
        %v1708 = vunpack.c.l.b16 %v597
        %v1709 = vunpack.c.h.b16 %v597
        %v1710 = vunpack.c.l.b16 %v598
        %v1711 = vunpack.c.h.b16 %v598
        %v1712 = vunpack.c.l.b16 %v599
        %v1713 = vunpack.c.h.b16 %v599
        %v1714 = vunpack.c.l.b16 %v600
        %v1715 = vunpack.c.h.b16 %v600
        %v1716 = vunpack.c.l.b16 %v601
        %v1717 = vunpack.c.h.b16 %v601
        %v1718 = vunpack.c.l.b16 %v602
        %v1719 = vunpack.c.h.b16 %v602
        %v1720 = vunpack.c.l.b16 %v603
        %v1721 = vunpack.c.h.b16 %v603
        %v1722 = vunpack.c.l.b16 %v604
        %v1723 = vunpack.c.h.b16 %v604
        %v1724 = vunpack.c.l.b16 %v605
        %v1725 = vunpack.c.h.b16 %v605
        %v1726 = vunpack.c.l.b16 %v606
        %v1727 = vunpack.c.h.b16 %v606
        %v1728 = vunpack.c.l.b16 %v607
        %v1729 = vunpack.c.h.b16 %v607
        %v1730 = vunpack.c.l.b16 %v608
        %v1731 = vunpack.c.h.b16 %v608
        %v1732 = vunpack.c.l.b16 %v609
        %v1733 = vunpack.c.h.b16 %v609
        %v1734 = vunpack.c.l.b16 %v610
        %v1735 = vunpack.c.h.b16 %v610
        %v1736 = vunpack.c.l.b16 %v611
        %v1737 = vunpack.c.h.b16 %v611
        %v1738 = vunpack.c.l.b16 %v612
        %v1739 = vunpack.c.h.b16 %v612
        %v1740 = vunpack.c.l.b16 %v613
        %v1741 = vunpack.c.h.b16 %v613
        %v1742 = vunpack.c.l.b16 %v614
        %v1743 = vunpack.c.h.b16 %v614
        %v1744 = vunpack.c.l.b16 %v615
        %v1745 = vunpack.c.h.b16 %v615
        %v1746 = vunpack.c.l.b16 %v616
        %v1747 = vunpack.c.h.b16 %v616
        %v1748 = vunpack.c.l.b16 %v617
        %v1749 = vunpack.c.h.b16 %v617
        %v1750 = vunpack.c.l.b16 %v618
        %v1751 = vunpack.c.h.b16 %v618
        %v1752 = vunpack.c.l.b16 %v619
        %v1753 = vunpack.c.h.b16 %v619
        %v1754 = vunpack.c.l.b16 %v620
        %v1755 = vunpack.c.h.b16 %v620
        %v1756 = vunpack.c.l.b16 %v621
        %v1757 = vunpack.c.h.b16 %v621
        %v1758 = vunpack.c.l.b16 %v622
        %v1759 = vunpack.c.h.b16 %v622
        %v1760 = vunpack.c.l.b16 %v623
        %v1761 = vunpack.c.h.b16 %v623
        %v1762 = vunpack.c.l.b16 %v624
        %v1763 = vunpack.c.h.b16 %v624
        %v1764 = vunpack.c.l.b16 %v625
        %v1765 = vunpack.c.h.b16 %v625
        %v1766 = vunpack.c.l.b16 %v626
        %v1767 = vunpack.c.h.b16 %v626
        %v1768 = vunpack.c.l.b16 %v627
        %v1769 = vunpack.c.h.b16 %v627
        %v1770 = vunpack.c.l.b16 %v628
        %v1771 = vunpack.c.h.b16 %v628
        %v1772 = vunpack.c.l.b16 %v629
        %v1773 = vunpack.c.h.b16 %v629
        %v1774 = vunpack.c.l.b16 %v630
        %v1775 = vunpack.c.h.b16 %v630
        %v1776 = vunpack.c.l.b16 %v631
        %v1777 = vunpack.c.h.b16 %v631
        %v1778 = vunpack.c.l.b16 %v632
        %v1779 = vunpack.c.h.b16 %v632
        %v1780 = vunpack.c.l.b16 %v633
        %v1781 = vunpack.c.h.b16 %v633
        %v1782 = vunpack.c.l.b16 %v634
        %v1783 = vunpack.c.h.b16 %v634
        %v1784 = vunpack.c.l.b16 %v635
        %v1785 = vunpack.c.h.b16 %v635
        %v1786 = vunpack.c.l.b16 %v636
        %v1787 = vunpack.c.h.b16 %v636
        %v1788 = vunpack.c.l.b16 %v637
        %v1789 = vunpack.c.h.b16 %v637
        %v1790 = vunpack.c.l.b16 %v638
        %v1791 = vunpack.c.h.b16 %v638
        %v1792 = vunpack.c.l.b16 %v639
        %v1793 = vunpack.c.h.b16 %v639
        %v1794 = vunpack.c.l.b16 %v640
        %v1795 = vunpack.c.h.b16 %v640
        %v1796 = vunpack.c.l.b16 %v641
        %v1797 = vunpack.c.h.b16 %v641
        %v1798 = vunpack.c.l.b16 %v642
        %v1799 = vunpack.c.h.b16 %v642
        %v1800 = vunpack.c.l.b16 %v643
        %v1801 = vunpack.c.h.b16 %v643
        %v1802 = vunpack.c.l.b16 %v644
        %v1803 = vunpack.c.h.b16 %v644
        %v1804 = vunpack.c.l.b16 %v645
        %v1805 = vunpack.c.h.b16 %v645
        %v1806 = vunpack.c.l.b16 %v646
        %v1807 = vunpack.c.h.b16 %v646
        %v1808 = vunpack.c.l.b16 %v647
        %v1809 = vunpack.c.h.b16 %v647
        %v1810 = vunpack.c.l.b16 %v648
        %v1811 = vunpack.c.h.b16 %v648
        %v1812 = vunpack.c.l.b16 %v649
        %v1813 = vunpack.c.h.b16 %v649
        %v1814 = vunpack.c.l.b16 %v650
        %v1815 = vunpack.c.h.b16 %v650
        %v1816 = vunpack.c.l.b16 %v651
        %v1817 = vunpack.c.h.b16 %v651
        %v1818 = vunpack.c.l.b16 %v652
        %v1819 = vunpack.c.h.b16 %v652
        %v1820 = vunpack.c.l.b16 %v653
        %v1821 = vunpack.c.h.b16 %v653
        %v1822 = vunpack.c.l.b16 %v654
        %v1823 = vunpack.c.h.b16 %v654
        %v1824 = vunpack.c.l.b16 %v655
        %v1825 = vunpack.c.h.b16 %v655
        %v1826 = vunpack.c.l.b16 %v656
        %v1827 = vunpack.c.h.b16 %v656
        %v1828 = vunpack.c.l.b16 %v657
        %v1829 = vunpack.c.h.b16 %v657
        %v1830 = vunpack.c.l.b16 %v658
        %v1831 = vunpack.c.h.b16 %v658
        %v1832 = vunpack.c.l.b16 %v659
        %v1833 = vunpack.c.h.b16 %v659
        %v1834 = vunpack.c.l.b16 %v660
        %v1835 = vunpack.c.h.b16 %v660
        %v1836 = vunpack.c.l.b16 %v661
        %v1837 = vunpack.c.h.b16 %v661
        %v1838 = vunpack.c.l.b16 %v662
        %v1839 = vunpack.c.h.b16 %v662
        %v1840 = vunpack.c.l.b16 %v663
        %v1841 = vunpack.c.h.b16 %v663
        %v1842 = vunpack.c.l.b16 %v664
        %v1843 = vunpack.c.h.b16 %v664
        %v1844 = vunpack.c.l.b16 %v665
        %v1845 = vunpack.c.h.b16 %v665
        %v1846 = vunpack.c.l.b16 %v666
        %v1847 = vunpack.c.h.b16 %v666
        %v1848 = vunpack.c.l.b16 %v667
        %v1849 = vunpack.c.h.b16 %v667
        %v1850 = vunpack.c.l.b16 %v668
        %v1851 = vunpack.c.h.b16 %v668
        %v1852 = vunpack.c.l.b16 %v669
        %v1853 = vunpack.c.h.b16 %v669
        %v1854 = vunpack.c.l.b16 %v670
        %v1855 = vunpack.c.h.b16 %v670
        %v1856 = vunpack.c.l.b16 %v671
        %v1857 = vunpack.c.h.b16 %v671
        %v1858 = vunpack.c.l.b16 %v672
        %v1859 = vunpack.c.h.b16 %v672
        %v1860 = vunpack.c.l.b16 %v673
        %v1861 = vunpack.c.h.b16 %v673
        %v1862 = vunpack.c.l.b16 %v674
        %v1863 = vunpack.c.h.b16 %v674
        %v1864 = vunpack.c.l.b16 %v675
        %v1865 = vunpack.c.h.b16 %v675
        %v1866 = vunpack.c.l.b16 %v676
        %v1867 = vunpack.c.h.b16 %v676
        %v1868 = vunpack.c.l.b16 %v677
        %v1869 = vunpack.c.h.b16 %v677
        %v1870 = vunpack.c.l.b16 %v678
        %v1871 = vunpack.c.h.b16 %v678
        %v1872 = vunpack.c.l.b16 %v679
        %v1873 = vunpack.c.h.b16 %v679
        %v1874 = vunpack.c.l.b16 %v680
        %v1875 = vunpack.c.h.b16 %v680
        %v1876 = vunpack.c.l.b16 %v681
        %v1877 = vunpack.c.h.b16 %v681
        %v1878 = vunpack.c.l.b16 %v682
        %v1879 = vunpack.c.h.b16 %v682
        %v1880 = vunpack.c.l.b16 %v683
        %v1881 = vunpack.c.h.b16 %v683
        %v1882 = vunpack.c.l.b16 %v684
        %v1883 = vunpack.c.h.b16 %v684
        %v1884 = vunpack.c.l.b16 %v685
        %v1885 = vunpack.c.h.b16 %v685
        %v1886 = vunpack.c.l.b16 %v686
        %v1887 = vunpack.c.h.b16 %v686
        %v1888 = vunpack.c.l.b16 %v687
        %v1889 = vunpack.c.h.b16 %v687
        %v1890 = vunpack.c.l.b16 %v688
        %v1891 = vunpack.c.h.b16 %v688
        %v1892 = vunpack.c.l.b16 %v689
        %v1893 = vunpack.c.h.b16 %v689
        %v1894 = vunpack.c.l.b16 %v690
        %v1895 = vunpack.c.h.b16 %v690
        %v1896 = vunpack.c.l.b16 %v691
        %v1897 = vunpack.c.h.b16 %v691
        %v1898 = vunpack.c.l.b16 %v692
        %v1899 = vunpack.c.h.b16 %v692
        %v1900 = vunpack.c.l.b16 %v693
        %v1901 = vunpack.c.h.b16 %v693
        %v1902 = vunpack.c.l.b16 %v694
        %v1903 = vunpack.c.h.b16 %v694
        %v1904 = vunpack.c.l.b16 %v695
        %v1905 = vunpack.c.h.b16 %v695
        %v1906 = vunpack.c.l.b16 %v696
        %v1907 = vunpack.c.h.b16 %v696
        %v1908 = vunpack.c.l.b16 %v697
        %v1909 = vunpack.c.h.b16 %v697
        %v1910 = vunpack.c.l.b16 %v698
        %v1911 = vunpack.c.h.b16 %v698
        %v1912 = vunpack.c.l.b16 %v699
        %v1913 = vunpack.c.h.b16 %v699
        %v1914 = vunpack.c.l.b16 %v700
        %v1915 = vunpack.c.h.b16 %v700
        %v1916 = vunpack.c.l.b16 %v701
        %v1917 = vunpack.c.h.b16 %v701
        %v1918 = vunpack.c.l.b16 %v702
        %v1919 = vunpack.c.h.b16 %v702
        %v1920 = vunpack.c.l.b16 %v703
        %v1921 = vunpack.c.h.b16 %v703
        %v1922 = vunpack.c.l.b16 %v704
        %v1923 = vunpack.c.h.b16 %v704
        %v1924 = vunpack.c.l.b16 %v705
        %v1925 = vunpack.c.h.b16 %v705
        %v1926 = vunpack.c.l.b16 %v706
        %v1927 = vunpack.c.h.b16 %v706
        %v1928 = vunpack.c.l.b16 %v707
        %v1929 = vunpack.c.h.b16 %v707
        %v1930 = vunpack.c.l.b16 %v708
        %v1931 = vunpack.c.h.b16 %v708
        %v1932 = vunpack.c.l.b16 %v709
        %v1933 = vunpack.c.h.b16 %v709
        %v1934 = vunpack.c.l.b16 %v710
        %v1935 = vunpack.c.h.b16 %v710
        %v1936 = vunpack.c.l.b16 %v711
        %v1937 = vunpack.c.h.b16 %v711
        %v1938 = vunpack.c.l.b16 %v712
        %v1939 = vunpack.c.h.b16 %v712
        %v1940 = vunpack.c.l.b16 %v713
        %v1941 = vunpack.c.h.b16 %v713
        %v1942 = vunpack.c.l.b16 %v714
        %v1943 = vunpack.c.h.b16 %v714
        %v1944 = vunpack.c.l.b16 %v715
        %v1945 = vunpack.c.h.b16 %v715
        %v1946 = vunpack.c.l.b16 %v716
        %v1947 = vunpack.c.h.b16 %v716
        %v1948 = vunpack.c.l.b16 %v717
        %v1949 = vunpack.c.h.b16 %v717
        %v1950 = vunpack.c.l.b16 %v718
        %v1951 = vunpack.c.h.b16 %v718
        %v1952 = vunpack.c.l.b16 %v719
        %v1953 = vunpack.c.h.b16 %v719
        %v1954 = vunpack.c.l.b16 %v720
        %v1955 = vunpack.c.h.b16 %v720
        %v1956 = vunpack.c.l.b16 %v721
        %v1957 = vunpack.c.h.b16 %v721
        %v1958 = vpack.c.b16 %v1192, %v1190
        %v1959 = vpack.c.b16 %v1193, %v1191
        %v1960 = vpack.c.b16 %v1196, %v1194
        %v1961 = vpack.c.b16 %v1197, %v1195
        %v1962 = vpack.c.b16 %v1200, %v1198
        %v1963 = vpack.c.b16 %v1201, %v1199
        %v1964 = vpack.c.b16 %v1204, %v1202
        %v1965 = vpack.c.b16 %v1205, %v1203
        %v1966 = vpack.c.b16 %v1208, %v1206
        %v1967 = vpack.c.b16 %v1209, %v1207
        %v1968 = vpack.c.b16 %v1212, %v1210
        %v1969 = vpack.c.b16 %v1213, %v1211
        %v1970 = vpack.c.b16 %v1216, %v1214
        %v1971 = vpack.c.b16 %v1217, %v1215
        %v1972 = vpack.c.b16 %v1220, %v1218
        %v1973 = vpack.c.b16 %v1221, %v1219
        %v1974 = vpack.c.b16 %v1224, %v1222
        %v1975 = vpack.c.b16 %v1225, %v1223
        %v1976 = vpack.c.b16 %v1228, %v1226
        %v1977 = vpack.c.b16 %v1229, %v1227
        %v1978 = vpack.c.b16 %v1232, %v1230
        %v1979 = vpack.c.b16 %v1233, %v1231
        %v1980 = vpack.c.b16 %v1236, %v1234
        %v1981 = vpack.c.b16 %v1237, %v1235
        %v1982 = vpack.c.b16 %v1240, %v1238
        %v1983 = vpack.c.b16 %v1241, %v1239
        %v1984 = vpack.c.b16 %v1244, %v1242
        %v1985 = vpack.c.b16 %v1245, %v1243
        %v1986 = vpack.c.b16 %v1248, %v1246
        %v1987 = vpack.c.b16 %v1249, %v1247
        %v1988 = vpack.c.b16 %v1252, %v1250
        %v1989 = vpack.c.b16 %v1253, %v1251
        %v1990 = vpack.c.b16 %v1256, %v1254
        %v1991 = vpack.c.b16 %v1257, %v1255
        %v1992 = vpack.c.b16 %v1260, %v1258
        %v1993 = vpack.c.b16 %v1261, %v1259
        %v1994 = vpack.c.b16 %v1264, %v1262
        %v1995 = vpack.c.b16 %v1265, %v1263
        %v1996 = vpack.c.b16 %v1268, %v1266
        %v1997 = vpack.c.b16 %v1269, %v1267
        %v1998 = vpack.c.b16 %v1272, %v1270
        %v1999 = vpack.c.b16 %v1273, %v1271
        %v2000 = vpack.c.b16 %v1276, %v1274
        %v2001 = vpack.c.b16 %v1277, %v1275
        %v2002 = vpack.c.b16 %v1280, %v1278
        %v2003 = vpack.c.b16 %v1281, %v1279
        %v2004 = vpack.c.b16 %v1284, %v1282
        %v2005 = vpack.c.b16 %v1285, %v1283
        %v2006 = vpack.c.b16 %v1288, %v1286
        %v2007 = vpack.c.b16 %v1289, %v1287
        %v2008 = vpack.c.b16 %v1292, %v1290
        %v2009 = vpack.c.b16 %v1293, %v1291
        %v2010 = vpack.c.b16 %v1296, %v1294
        %v2011 = vpack.c.b16 %v1297, %v1295
        %v2012 = vpack.c.b16 %v1300, %v1298
        %v2013 = vpack.c.b16 %v1301, %v1299
        %v2014 = vpack.c.b16 %v1304, %v1302
        %v2015 = vpack.c.b16 %v1305, %v1303
        %v2016 = vpack.c.b16 %v1308, %v1306
        %v2017 = vpack.c.b16 %v1309, %v1307
        %v2018 = vpack.c.b16 %v1312, %v1310
        %v2019 = vpack.c.b16 %v1313, %v1311
        %v2020 = vpack.c.b16 %v1316, %v1314
        %v2021 = vpack.c.b16 %v1317, %v1315
        %v2022 = vpack.c.b16 %v1320, %v1318
        %v2023 = vpack.c.b16 %v1321, %v1319
        %v2024 = vpack.c.b16 %v1324, %v1322
        %v2025 = vpack.c.b16 %v1325, %v1323
        %v2026 = vpack.c.b16 %v1328, %v1326
        %v2027 = vpack.c.b16 %v1329, %v1327
        %v2028 = vpack.c.b16 %v1332, %v1330
        %v2029 = vpack.c.b16 %v1333, %v1331
        %v2030 = vpack.c.b16 %v1336, %v1334
        %v2031 = vpack.c.b16 %v1337, %v1335
        %v2032 = vpack.c.b16 %v1340, %v1338
        %v2033 = vpack.c.b16 %v1341, %v1339
        %v2034 = vpack.c.b16 %v1344, %v1342
        %v2035 = vpack.c.b16 %v1345, %v1343
        %v2036 = vpack.c.b16 %v1348, %v1346
        %v2037 = vpack.c.b16 %v1349, %v1347
        %v2038 = vpack.c.b16 %v1352, %v1350
        %v2039 = vpack.c.b16 %v1353, %v1351
        %v2040 = vpack.c.b16 %v1356, %v1354
        %v2041 = vpack.c.b16 %v1357, %v1355
        %v2042 = vpack.c.b16 %v1360, %v1358
        %v2043 = vpack.c.b16 %v1361, %v1359
        %v2044 = vpack.c.b16 %v1364, %v1362
        %v2045 = vpack.c.b16 %v1365, %v1363
        %v2046 = vpack.c.b16 %v1368, %v1366
        %v2047 = vpack.c.b16 %v1369, %v1367
        %v2048 = vpack.c.b16 %v1372, %v1370
        %v2049 = vpack.c.b16 %v1373, %v1371
        %v2050 = vpack.c.b16 %v1376, %v1374
        %v2051 = vpack.c.b16 %v1377, %v1375
        %v2052 = vpack.c.b16 %v1380, %v1378
        %v2053 = vpack.c.b16 %v1381, %v1379
        %v2054 = vpack.c.b16 %v1384, %v1382
        %v2055 = vpack.c.b16 %v1385, %v1383
        %v2056 = vpack.c.b16 %v1388, %v1386
        %v2057 = vpack.c.b16 %v1389, %v1387
        %v2058 = vpack.c.b16 %v1392, %v1390
        %v2059 = vpack.c.b16 %v1393, %v1391
        %v2060 = vpack.c.b16 %v1396, %v1394
        %v2061 = vpack.c.b16 %v1397, %v1395
        %v2062 = vpack.c.b16 %v1400, %v1398
        %v2063 = vpack.c.b16 %v1401, %v1399
        %v2064 = vpack.c.b16 %v1404, %v1402
        %v2065 = vpack.c.b16 %v1405, %v1403
        %v2066 = vpack.c.b16 %v1408, %v1406
        %v2067 = vpack.c.b16 %v1409, %v1407
        %v2068 = vpack.c.b16 %v1412, %v1410
        %v2069 = vpack.c.b16 %v1413, %v1411
        %v2070 = vpack.c.b16 %v1416, %v1414
        %v2071 = vpack.c.b16 %v1417, %v1415
        %v2072 = vpack.c.b16 %v1420, %v1418
        %v2073 = vpack.c.b16 %v1421, %v1419
        %v2074 = vpack.c.b16 %v1424, %v1422
        %v2075 = vpack.c.b16 %v1425, %v1423
        %v2076 = vpack.c.b16 %v1428, %v1426
        %v2077 = vpack.c.b16 %v1429, %v1427
        %v2078 = vpack.c.b16 %v1432, %v1430
        %v2079 = vpack.c.b16 %v1433, %v1431
        %v2080 = vpack.c.b16 %v1436, %v1434
        %v2081 = vpack.c.b16 %v1437, %v1435
        %v2082 = vpack.c.b16 %v1440, %v1438
        %v2083 = vpack.c.b16 %v1441, %v1439
        %v2084 = vpack.c.b16 %v1444, %v1442
        %v2085 = vpack.c.b16 %v1445, %v1443
        %v2086 = vpack.c.b16 %v1448, %v1446
        %v2087 = vpack.c.b16 %v1449, %v1447
        %v2088 = vpack.c.b16 %v1452, %v1450
        %v2089 = vpack.c.b16 %v1453, %v1451
        %v2090 = vpack.c.b16 %v1456, %v1454
        %v2091 = vpack.c.b16 %v1457, %v1455
        %v2092 = vpack.c.b16 %v1460, %v1458
        %v2093 = vpack.c.b16 %v1461, %v1459
        %v2094 = vpack.c.b16 %v1464, %v1462
        %v2095 = vpack.c.b16 %v1465, %v1463
        %v2096 = vpack.c.b16 %v1468, %v1466
        %v2097 = vpack.c.b16 %v1469, %v1467
        %v2098 = vpack.c.b16 %v1472, %v1470
        %v2099 = vpack.c.b16 %v1473, %v1471
        %v2100 = vpack.c.b16 %v1476, %v1474
        %v2101 = vpack.c.b16 %v1477, %v1475
        %v2102 = vpack.c.b16 %v1480, %v1478
        %v2103 = vpack.c.b16 %v1481, %v1479
        %v2104 = vpack.c.b16 %v1484, %v1482
        %v2105 = vpack.c.b16 %v1485, %v1483
        %v2106 = vpack.c.b16 %v1488, %v1486
        %v2107 = vpack.c.b16 %v1489, %v1487
        %v2108 = vpack.c.b16 %v1492, %v1490
        %v2109 = vpack.c.b16 %v1493, %v1491
        %v2110 = vpack.c.b16 %v1496, %v1494
        %v2111 = vpack.c.b16 %v1497, %v1495
        %v2112 = vpack.c.b16 %v1500, %v1498
        %v2113 = vpack.c.b16 %v1501, %v1499
        %v2114 = vpack.c.b16 %v1504, %v1502
        %v2115 = vpack.c.b16 %v1505, %v1503
        %v2116 = vpack.c.b16 %v1508, %v1506
        %v2117 = vpack.c.b16 %v1509, %v1507
        %v2118 = vpack.c.b16 %v1512, %v1510
        %v2119 = vpack.c.b16 %v1513, %v1511
        %v2120 = vpack.c.b16 %v1516, %v1514
        %v2121 = vpack.c.b16 %v1517, %v1515
        %v2122 = vpack.c.b16 %v1520, %v1518
        %v2123 = vpack.c.b16 %v1521, %v1519
        %v2124 = vpack.c.b16 %v1524, %v1522
        %v2125 = vpack.c.b16 %v1525, %v1523
        %v2126 = vpack.c.b16 %v1528, %v1526
        %v2127 = vpack.c.b16 %v1529, %v1527
        %v2128 = vpack.c.b16 %v1532, %v1530
        %v2129 = vpack.c.b16 %v1533, %v1531
        %v2130 = vpack.c.b16 %v1536, %v1534
        %v2131 = vpack.c.b16 %v1537, %v1535
        %v2132 = vpack.c.b16 %v1540, %v1538
        %v2133 = vpack.c.b16 %v1541, %v1539
        %v2134 = vpack.c.b16 %v1544, %v1542
        %v2135 = vpack.c.b16 %v1545, %v1543
        %v2136 = vpack.c.b16 %v1548, %v1546
        %v2137 = vpack.c.b16 %v1549, %v1547
        %v2138 = vpack.c.b16 %v1552, %v1550
        %v2139 = vpack.c.b16 %v1553, %v1551
        %v2140 = vpack.c.b16 %v1556, %v1554
        %v2141 = vpack.c.b16 %v1557, %v1555
        %v2142 = vpack.c.b16 %v1560, %v1558
        %v2143 = vpack.c.b16 %v1561, %v1559
        %v2144 = vpack.c.b16 %v1564, %v1562
        %v2145 = vpack.c.b16 %v1565, %v1563
        %v2146 = vpack.c.b16 %v1568, %v1566
        %v2147 = vpack.c.b16 %v1569, %v1567
        %v2148 = vpack.c.b16 %v1572, %v1570
        %v2149 = vpack.c.b16 %v1573, %v1571
        %v2150 = vpack.c.b16 %v1576, %v1574
        %v2151 = vpack.c.b16 %v1577, %v1575
        %v2152 = vpack.c.b16 %v1580, %v1578
        %v2153 = vpack.c.b16 %v1581, %v1579
        %v2154 = vpack.c.b16 %v1584, %v1582
        %v2155 = vpack.c.b16 %v1585, %v1583
        %v2156 = vpack.c.b16 %v1588, %v1586
        %v2157 = vpack.c.b16 %v1589, %v1587
        %v2158 = vpack.c.b16 %v1592, %v1590
        %v2159 = vpack.c.b16 %v1593, %v1591
        %v2160 = vpack.c.b16 %v1596, %v1594
        %v2161 = vpack.c.b16 %v1597, %v1595
        %v2162 = vpack.c.b16 %v1600, %v1598
        %v2163 = vpack.c.b16 %v1601, %v1599
        %v2164 = vpack.c.b16 %v1604, %v1602
        %v2165 = vpack.c.b16 %v1605, %v1603
        %v2166 = vpack.c.b16 %v1608, %v1606
        %v2167 = vpack.c.b16 %v1609, %v1607
        %v2168 = vpack.c.b16 %v1612, %v1610
        %v2169 = vpack.c.b16 %v1613, %v1611
        %v2170 = vpack.c.b16 %v1616, %v1614
        %v2171 = vpack.c.b16 %v1617, %v1615
        %v2172 = vpack.c.b16 %v1620, %v1618
        %v2173 = vpack.c.b16 %v1621, %v1619
        %v2174 = vpack.c.b16 %v1624, %v1622
        %v2175 = vpack.c.b16 %v1625, %v1623
        %v2176 = vpack.c.b16 %v1628, %v1626
        %v2177 = vpack.c.b16 %v1629, %v1627
        %v2178 = vpack.c.b16 %v1632, %v1630
        %v2179 = vpack.c.b16 %v1633, %v1631
        %v2180 = vpack.c.b16 %v1636, %v1634
        %v2181 = vpack.c.b16 %v1637, %v1635
        %v2182 = vpack.c.b16 %v1640, %v1638
        %v2183 = vpack.c.b16 %v1641, %v1639
        %v2184 = vpack.c.b16 %v1644, %v1642
        %v2185 = vpack.c.b16 %v1645, %v1643
        %v2186 = vpack.c.b16 %v1648, %v1646
        %v2187 = vpack.c.b16 %v1649, %v1647
        %v2188 = vpack.c.b16 %v1652, %v1650
        %v2189 = vpack.c.b16 %v1653, %v1651
        %v2190 = vpack.c.b16 %v1656, %v1654
        %v2191 = vpack.c.b16 %v1657, %v1655
        %v2192 = vpack.c.b16 %v1660, %v1658
        %v2193 = vpack.c.b16 %v1661, %v1659
        %v2194 = vpack.c.b16 %v1664, %v1662
        %v2195 = vpack.c.b16 %v1665, %v1663
        %v2196 = vpack.c.b16 %v1668, %v1666
        %v2197 = vpack.c.b16 %v1669, %v1667
        %v2198 = vpack.c.b16 %v1672, %v1670
        %v2199 = vpack.c.b16 %v1673, %v1671
        %v2200 = vpack.c.b16 %v1676, %v1674
        %v2201 = vpack.c.b16 %v1677, %v1675
        %v2202 = vpack.c.b16 %v1680, %v1678
        %v2203 = vpack.c.b16 %v1681, %v1679
        %v2204 = vpack.c.b16 %v1684, %v1682
        %v2205 = vpack.c.b16 %v1685, %v1683
        %v2206 = vpack.c.b16 %v1688, %v1686
        %v2207 = vpack.c.b16 %v1689, %v1687
        %v2208 = vpack.c.b16 %v1692, %v1690
        %v2209 = vpack.c.b16 %v1693, %v1691
        %v2210 = vpack.c.b16 %v1696, %v1694
        %v2211 = vpack.c.b16 %v1697, %v1695
        %v2212 = vpack.c.b16 %v1700, %v1698
        %v2213 = vpack.c.b16 %v1701, %v1699
        %v2214 = vpack.c.b16 %v1704, %v1702
        %v2215 = vpack.c.b16 %v1705, %v1703
        %v2216 = vpack.c.b16 %v1708, %v1706
        %v2217 = vpack.c.b16 %v1709, %v1707
        %v2218 = vpack.c.b16 %v1712, %v1710
        %v2219 = vpack.c.b16 %v1713, %v1711
        %v2220 = vpack.c.b16 %v1716, %v1714
        %v2221 = vpack.c.b16 %v1717, %v1715
        %v2222 = vpack.c.b16 %v1720, %v1718
        %v2223 = vpack.c.b16 %v1721, %v1719
        %v2224 = vpack.c.b16 %v1724, %v1722
        %v2225 = vpack.c.b16 %v1725, %v1723
        %v2226 = vpack.c.b16 %v1728, %v1726
        %v2227 = vpack.c.b16 %v1729, %v1727
        %v2228 = vpack.c.b16 %v1732, %v1730
        %v2229 = vpack.c.b16 %v1733, %v1731
        %v2230 = vpack.c.b16 %v1736, %v1734
        %v2231 = vpack.c.b16 %v1737, %v1735
        %v2232 = vpack.c.b16 %v1740, %v1738
        %v2233 = vpack.c.b16 %v1741, %v1739
        %v2234 = vpack.c.b16 %v1744, %v1742
        %v2235 = vpack.c.b16 %v1745, %v1743
        %v2236 = vpack.c.b16 %v1748, %v1746
        %v2237 = vpack.c.b16 %v1749, %v1747
        %v2238 = vpack.c.b16 %v1752, %v1750
        %v2239 = vpack.c.b16 %v1753, %v1751
        %v2240 = vpack.c.b16 %v1756, %v1754
        %v2241 = vpack.c.b16 %v1757, %v1755
        %v2242 = vpack.c.b16 %v1760, %v1758
        %v2243 = vpack.c.b16 %v1761, %v1759
        %v2244 = vpack.c.b16 %v1764, %v1762
        %v2245 = vpack.c.b16 %v1765, %v1763
        %v2246 = vpack.c.b16 %v1768, %v1766
        %v2247 = vpack.c.b16 %v1769, %v1767
        %v2248 = vpack.c.b16 %v1772, %v1770
        %v2249 = vpack.c.b16 %v1773, %v1771
        %v2250 = vpack.c.b16 %v1776, %v1774
        %v2251 = vpack.c.b16 %v1777, %v1775
        %v2252 = vpack.c.b16 %v1780, %v1778
        %v2253 = vpack.c.b16 %v1781, %v1779
        %v2254 = vpack.c.b16 %v1784, %v1782
        %v2255 = vpack.c.b16 %v1785, %v1783
        %v2256 = vpack.c.b16 %v1788, %v1786
        %v2257 = vpack.c.b16 %v1789, %v1787
        %v2258 = vpack.c.b16 %v1792, %v1790
        %v2259 = vpack.c.b16 %v1793, %v1791
        %v2260 = vpack.c.b16 %v1796, %v1794
        %v2261 = vpack.c.b16 %v1797, %v1795
        %v2262 = vpack.c.b16 %v1800, %v1798
        %v2263 = vpack.c.b16 %v1801, %v1799
        %v2264 = vpack.c.b16 %v1804, %v1802
        %v2265 = vpack.c.b16 %v1805, %v1803
        %v2266 = vpack.c.b16 %v1808, %v1806
        %v2267 = vpack.c.b16 %v1809, %v1807
        %v2268 = vpack.c.b16 %v1812, %v1810
        %v2269 = vpack.c.b16 %v1813, %v1811
        %v2270 = vpack.c.b16 %v1816, %v1814
        %v2271 = vpack.c.b16 %v1817, %v1815
        %v2272 = vpack.c.b16 %v1820, %v1818
        %v2273 = vpack.c.b16 %v1821, %v1819
        %v2274 = vpack.c.b16 %v1824, %v1822
        %v2275 = vpack.c.b16 %v1825, %v1823
        %v2276 = vpack.c.b16 %v1828, %v1826
        %v2277 = vpack.c.b16 %v1829, %v1827
        %v2278 = vpack.c.b16 %v1832, %v1830
        %v2279 = vpack.c.b16 %v1833, %v1831
        %v2280 = vpack.c.b16 %v1836, %v1834
        %v2281 = vpack.c.b16 %v1837, %v1835
        %v2282 = vpack.c.b16 %v1840, %v1838
        %v2283 = vpack.c.b16 %v1841, %v1839
        %v2284 = vpack.c.b16 %v1844, %v1842
        %v2285 = vpack.c.b16 %v1845, %v1843
        %v2286 = vpack.c.b16 %v1848, %v1846
        %v2287 = vpack.c.b16 %v1849, %v1847
        %v2288 = vpack.c.b16 %v1852, %v1850
        %v2289 = vpack.c.b16 %v1853, %v1851
        %v2290 = vpack.c.b16 %v1856, %v1854
        %v2291 = vpack.c.b16 %v1857, %v1855
        %v2292 = vpack.c.b16 %v1860, %v1858
        %v2293 = vpack.c.b16 %v1861, %v1859
        %v2294 = vpack.c.b16 %v1864, %v1862
        %v2295 = vpack.c.b16 %v1865, %v1863
        %v2296 = vpack.c.b16 %v1868, %v1866
        %v2297 = vpack.c.b16 %v1869, %v1867
        %v2298 = vpack.c.b16 %v1872, %v1870
        %v2299 = vpack.c.b16 %v1873, %v1871
        %v2300 = vpack.c.b16 %v1876, %v1874
        %v2301 = vpack.c.b16 %v1877, %v1875
        %v2302 = vpack.c.b16 %v1880, %v1878
        %v2303 = vpack.c.b16 %v1881, %v1879
        %v2304 = vpack.c.b16 %v1884, %v1882
        %v2305 = vpack.c.b16 %v1885, %v1883
        %v2306 = vpack.c.b16 %v1888, %v1886
        %v2307 = vpack.c.b16 %v1889, %v1887
        %v2308 = vpack.c.b16 %v1892, %v1890
        %v2309 = vpack.c.b16 %v1893, %v1891
        %v2310 = vpack.c.b16 %v1896, %v1894
        %v2311 = vpack.c.b16 %v1897, %v1895
        %v2312 = vpack.c.b16 %v1900, %v1898
        %v2313 = vpack.c.b16 %v1901, %v1899
        %v2314 = vpack.c.b16 %v1904, %v1902
        %v2315 = vpack.c.b16 %v1905, %v1903
        %v2316 = vpack.c.b16 %v1908, %v1906
        %v2317 = vpack.c.b16 %v1909, %v1907
        %v2318 = vpack.c.b16 %v1912, %v1910
        %v2319 = vpack.c.b16 %v1913, %v1911
        %v2320 = vpack.c.b16 %v1916, %v1914
        %v2321 = vpack.c.b16 %v1917, %v1915
        %v2322 = vpack.c.b16 %v1920, %v1918
        %v2323 = vpack.c.b16 %v1921, %v1919
        %v2324 = vpack.c.b16 %v1924, %v1922
        %v2325 = vpack.c.b16 %v1925, %v1923
        %v2326 = vpack.c.b16 %v1928, %v1926
        %v2327 = vpack.c.b16 %v1929, %v1927
        %v2328 = vpack.c.b16 %v1932, %v1930
        %v2329 = vpack.c.b16 %v1933, %v1931
        %v2330 = vpack.c.b16 %v1936, %v1934
        %v2331 = vpack.c.b16 %v1937, %v1935
        %v2332 = vpack.c.b16 %v1940, %v1938
        %v2333 = vpack.c.b16 %v1941, %v1939
        %v2334 = vpack.c.b16 %v1944, %v1942
        %v2335 = vpack.c.b16 %v1945, %v1943
        %v2336 = vpack.c.b16 %v1948, %v1946
        %v2337 = vpack.c.b16 %v1949, %v1947
        %v2338 = vpack.c.b16 %v1952, %v1950
        %v2339 = vpack.c.b16 %v1953, %v1951
        %v2340 = vpack.c.b16 %v1956, %v1954
        %v2341 = vpack.c.b16 %v1957, %v1955
        %2726 = vmatprep.subr.bf16.mxu0 %v1973
        %2727 = vmatpush1.bf16.msra.mxu0 %v1972
        %2728 = vmatprep.subr.bf16.mxu0 %v1971
        %2729 = vmatpush1.bf16.msra.mxu0 %v1970
        %2730 = vmatprep.subr.bf16.mxu0 %v1969
        %2731 = vmatpush1.bf16.msra.mxu0 %v1968
        %2732 = vmatprep.subr.bf16.mxu0 %v1967
        %2733 = vmatpush1.bf16.msra.mxu0 %v1966
        %2734 = vmatprep.subr.bf16.mxu0 %v1965
        %2735 = vmatpush1.bf16.msra.mxu0 %v1964
        %2736 = vmatprep.subr.bf16.mxu0 %v1963
        %2737 = vmatpush1.bf16.msra.mxu0 %v1962
        %2738 = vmatprep.subr.bf16.mxu0 %v1961
        %2739 = vmatpush1.bf16.msra.mxu0 %v1960
        %2740 = vmatprep.subr.bf16.mxu0 %v1959
        %2741 = vmatpush1.bf16.msra.mxu0 %v1958
        %2742 = vmatprep.subr.bf16.mxu0 %v1989
        %2743 = vmatpush2.bf16.msra.mxu0 %v1988
        %2744 = vmatprep.subr.bf16.mxu0 %v1987
        %2745 = vmatpush2.bf16.msra.mxu0 %v1986
        %2746 = vmatprep.subr.bf16.mxu0 %v1985
        %2747 = vmatpush2.bf16.msra.mxu0 %v1984
        %2748 = vmatprep.subr.bf16.mxu0 %v1983
        %2749 = vmatpush2.bf16.msra.mxu0 %v1982
        %2750 = vmatprep.subr.bf16.mxu0 %v1981
        %2751 = vmatpush2.bf16.msra.mxu0 %v1980
        %2752 = vmatprep.subr.bf16.mxu0 %v1979
        %2753 = vmatpush2.bf16.msra.mxu0 %v1978
        %2754 = vmatprep.subr.bf16.mxu0 %v1977
        %2755 = vmatpush2.bf16.msra.mxu0 %v1976
        %2756 = vmatprep.subr.bf16.mxu0 %v1975
        %2757 = vmatpush2.bf16.msra.mxu0 %v1974
        %2758 = vmatprep.mubr.bf16.mxu0 %v759
        %2759 = vmatmul.mubr.bf16.gmra.mxu0 %v758
        %v2760 = vpop.f32.mrf.mxu0
        %v2761 = vadd.f32 0.0, %v2760
        %v2762 = vpop.f32.mrf.mxu0
        %v2763 = vadd.f32 0.0, %v2762
        %v2764 = vpop.f32.mrf.mxu0
        %v2765 = vpop.f32.mrf.mxu0
        %2766 = vdwg.mxu0
        %2767 = vmatprep.subr.bf16.mxu0 %v2005
        %2768 = vmatpush1.bf16.msra.mxu0 %v2004
        %2769 = vmatprep.subr.bf16.mxu0 %v2003
        %2770 = vmatpush1.bf16.msra.mxu0 %v2002
        %2771 = vmatprep.subr.bf16.mxu0 %v2001
        %2772 = vmatpush1.bf16.msra.mxu0 %v2000
        %2773 = vmatprep.subr.bf16.mxu0 %v1999
        %2774 = vmatpush1.bf16.msra.mxu0 %v1998
        %2775 = vmatprep.subr.bf16.mxu0 %v1997
        %2776 = vmatpush1.bf16.msra.mxu0 %v1996
        %2777 = vmatprep.subr.bf16.mxu0 %v1995
        %2778 = vmatpush1.bf16.msra.mxu0 %v1994
        %2779 = vmatprep.subr.bf16.mxu0 %v1993
        %2780 = vmatpush1.bf16.msra.mxu0 %v1992
        %2781 = vmatprep.subr.bf16.mxu0 %v1991
        %2782 = vmatpush1.bf16.msra.mxu0 %v1990
        %2783 = vmatprep.subr.bf16.mxu0 %v2021
        %2784 = vmatpush2.bf16.msra.mxu0 %v2020
        %2785 = vmatprep.subr.bf16.mxu0 %v2019
        %2786 = vmatpush2.bf16.msra.mxu0 %v2018
        %2787 = vmatprep.subr.bf16.mxu0 %v2017
        %2788 = vmatpush2.bf16.msra.mxu0 %v2016
        %2789 = vmatprep.subr.bf16.mxu0 %v2015
        %2790 = vmatpush2.bf16.msra.mxu0 %v2014
        %2791 = vmatprep.subr.bf16.mxu0 %v2013
        %2792 = vmatpush2.bf16.msra.mxu0 %v2012
        %2793 = vmatprep.subr.bf16.mxu0 %v2011
        %2794 = vmatpush2.bf16.msra.mxu0 %v2010
        %2795 = vmatprep.subr.bf16.mxu0 %v2009
        %2796 = vmatpush2.bf16.msra.mxu0 %v2008
        %2797 = vmatprep.subr.bf16.mxu0 %v2007
        %2798 = vmatpush2.bf16.msra.mxu0 %v2006
        %2799 = vmatprep.mubr.bf16.mxu0 %v761
        %2800 = vmatmul.mubr.bf16.gmra.mxu0 %v760
        %v2801 = vpop.f32.mrf.mxu0
        %v2802 = vadd.f32 %v2761, %v2801
        %v2803 = vpop.f32.mrf.mxu0
        %v2804 = vadd.f32 %v2763, %v2803
        %v2805 = vpop.f32.mrf.mxu0
        %v2806 = vpop.f32.mrf.mxu0
        %2807 = vdwg.mxu0
        %2808 = vmatprep.subr.bf16.mxu0 %v2037
        %2809 = vmatpush1.bf16.msra.mxu0 %v2036
        %2810 = vmatprep.subr.bf16.mxu0 %v2035
        %2811 = vmatpush1.bf16.msra.mxu0 %v2034
        %2812 = vmatprep.subr.bf16.mxu0 %v2033
        %2813 = vmatpush1.bf16.msra.mxu0 %v2032
        %2814 = vmatprep.subr.bf16.mxu0 %v2031
        %2815 = vmatpush1.bf16.msra.mxu0 %v2030
        %2816 = vmatprep.subr.bf16.mxu0 %v2029
        %2817 = vmatpush1.bf16.msra.mxu0 %v2028
        %2818 = vmatprep.subr.bf16.mxu0 %v2027
        %2819 = vmatpush1.bf16.msra.mxu0 %v2026
        %2820 = vmatprep.subr.bf16.mxu0 %v2025
        %2821 = vmatpush1.bf16.msra.mxu0 %v2024
        %2822 = vmatprep.subr.bf16.mxu0 %v2023
        %2823 = vmatpush1.bf16.msra.mxu0 %v2022
        %2824 = vmatprep.subr.bf16.mxu0 %v2053
        %2825 = vmatpush2.bf16.msra.mxu0 %v2052
        %2826 = vmatprep.subr.bf16.mxu0 %v2051
        %2827 = vmatpush2.bf16.msra.mxu0 %v2050
        %2828 = vmatprep.subr.bf16.mxu0 %v2049
        %2829 = vmatpush2.bf16.msra.mxu0 %v2048
        %2830 = vmatprep.subr.bf16.mxu0 %v2047
        %2831 = vmatpush2.bf16.msra.mxu0 %v2046
        %2832 = vmatprep.subr.bf16.mxu0 %v2045
        %2833 = vmatpush2.bf16.msra.mxu0 %v2044
        %2834 = vmatprep.subr.bf16.mxu0 %v2043
        %2835 = vmatpush2.bf16.msra.mxu0 %v2042
        %2836 = vmatprep.subr.bf16.mxu0 %v2041
        %2837 = vmatpush2.bf16.msra.mxu0 %v2040
        %2838 = vmatprep.subr.bf16.mxu0 %v2039
        %2839 = vmatpush2.bf16.msra.mxu0 %v2038
        %2840 = vmatprep.mubr.bf16.mxu0 %v763
        %2841 = vmatmul.mubr.bf16.gmra.mxu0 %v762
        %v2842 = vpop.f32.mrf.mxu0
        %v2843 = vadd.f32 %v2802, %v2842
        %v2844 = vpop.f32.mrf.mxu0
        %v2845 = vadd.f32 %v2804, %v2844
        %v2846 = vpop.f32.mrf.mxu0
        %v2847 = vpop.f32.mrf.mxu0
        %2848 = vdwg.mxu0
        %2849 = vmatprep.subr.bf16.mxu0 %v2069
        %2850 = vmatpush1.bf16.msra.mxu0 %v2068
        %2851 = vmatprep.subr.bf16.mxu0 %v2067
        %2852 = vmatpush1.bf16.msra.mxu0 %v2066
        %2853 = vmatprep.subr.bf16.mxu0 %v2065
        %2854 = vmatpush1.bf16.msra.mxu0 %v2064
        %2855 = vmatprep.subr.bf16.mxu0 %v2063
        %2856 = vmatpush1.bf16.msra.mxu0 %v2062
        %2857 = vmatprep.subr.bf16.mxu0 %v2061
        %2858 = vmatpush1.bf16.msra.mxu0 %v2060
        %2859 = vmatprep.subr.bf16.mxu0 %v2059
        %2860 = vmatpush1.bf16.msra.mxu0 %v2058
        %2861 = vmatprep.subr.bf16.mxu0 %v2057
        %2862 = vmatpush1.bf16.msra.mxu0 %v2056
        %2863 = vmatprep.subr.bf16.mxu0 %v2055
        %2864 = vmatpush1.bf16.msra.mxu0 %v2054
        %2865 = vmatprep.subr.bf16.mxu0 %v2085
        %2866 = vmatpush2.bf16.msra.mxu0 %v2084
        %2867 = vmatprep.subr.bf16.mxu0 %v2083
        %2868 = vmatpush2.bf16.msra.mxu0 %v2082
        %2869 = vmatprep.subr.bf16.mxu0 %v2081
        %2870 = vmatpush2.bf16.msra.mxu0 %v2080
        %2871 = vmatprep.subr.bf16.mxu0 %v2079
        %2872 = vmatpush2.bf16.msra.mxu0 %v2078
        %2873 = vmatprep.subr.bf16.mxu0 %v2077
        %2874 = vmatpush2.bf16.msra.mxu0 %v2076
        %2875 = vmatprep.subr.bf16.mxu0 %v2075
        %2876 = vmatpush2.bf16.msra.mxu0 %v2074
        %2877 = vmatprep.subr.bf16.mxu0 %v2073
        %2878 = vmatpush2.bf16.msra.mxu0 %v2072
        %2879 = vmatprep.subr.bf16.mxu0 %v2071
        %2880 = vmatpush2.bf16.msra.mxu0 %v2070
        %2881 = vmatprep.mubr.bf16.mxu0 %v765
        %2882 = vmatmul.mubr.bf16.gmra.mxu0 %v764
        %v2883 = vpop.f32.mrf.mxu0
        %v2884 = vadd.f32 %v2843, %v2883
        %v2885 = vpop.f32.mrf.mxu0
        %v2886 = vadd.f32 %v2845, %v2885
        %v2887 = vpop.f32.mrf.mxu0
        %v2888 = vpop.f32.mrf.mxu0
        %2889 = vdwg.mxu0
        %2890 = vmatprep.subr.bf16.mxu0 %v2101
        %2891 = vmatpush1.bf16.msra.mxu0 %v2100
        %2892 = vmatprep.subr.bf16.mxu0 %v2099
        %2893 = vmatpush1.bf16.msra.mxu0 %v2098
        %2894 = vmatprep.subr.bf16.mxu0 %v2097
        %2895 = vmatpush1.bf16.msra.mxu0 %v2096
        %2896 = vmatprep.subr.bf16.mxu0 %v2095
        %2897 = vmatpush1.bf16.msra.mxu0 %v2094
        %2898 = vmatprep.subr.bf16.mxu0 %v2093
        %2899 = vmatpush1.bf16.msra.mxu0 %v2092
        %2900 = vmatprep.subr.bf16.mxu0 %v2091
        %2901 = vmatpush1.bf16.msra.mxu0 %v2090
        %2902 = vmatprep.subr.bf16.mxu0 %v2089
        %2903 = vmatpush1.bf16.msra.mxu0 %v2088
        %2904 = vmatprep.subr.bf16.mxu0 %v2087
        %2905 = vmatpush1.bf16.msra.mxu0 %v2086
        %2906 = vmatprep.subr.bf16.mxu0 %v2117
        %2907 = vmatpush2.bf16.msra.mxu0 %v2116
        %2908 = vmatprep.subr.bf16.mxu0 %v2115
        %2909 = vmatpush2.bf16.msra.mxu0 %v2114
        %2910 = vmatprep.subr.bf16.mxu0 %v2113
        %2911 = vmatpush2.bf16.msra.mxu0 %v2112
        %2912 = vmatprep.subr.bf16.mxu0 %v2111
        %2913 = vmatpush2.bf16.msra.mxu0 %v2110
        %2914 = vmatprep.subr.bf16.mxu0 %v2109
        %2915 = vmatpush2.bf16.msra.mxu0 %v2108
        %2916 = vmatprep.subr.bf16.mxu0 %v2107
        %2917 = vmatpush2.bf16.msra.mxu0 %v2106
        %2918 = vmatprep.subr.bf16.mxu0 %v2105
        %2919 = vmatpush2.bf16.msra.mxu0 %v2104
        %2920 = vmatprep.subr.bf16.mxu0 %v2103
        %2921 = vmatpush2.bf16.msra.mxu0 %v2102
        %2922 = vmatprep.mubr.bf16.mxu0 %v767
        %2923 = vmatmul.mubr.bf16.gmra.mxu0 %v766
        %v2924 = vpop.f32.mrf.mxu0
        %v2925 = vadd.f32 %v2884, %v2924
        %v2926 = vpop.f32.mrf.mxu0
        %v2927 = vadd.f32 %v2886, %v2926
        %v2928 = vpop.f32.mrf.mxu0
        %v2929 = vpop.f32.mrf.mxu0
        %2930 = vdwg.mxu0
        %2931 = vmatprep.subr.bf16.mxu0 %v2133
        %2932 = vmatpush1.bf16.msra.mxu0 %v2132
        %2933 = vmatprep.subr.bf16.mxu0 %v2131
        %2934 = vmatpush1.bf16.msra.mxu0 %v2130
        %2935 = vmatprep.subr.bf16.mxu0 %v2129
        %2936 = vmatpush1.bf16.msra.mxu0 %v2128
        %2937 = vmatprep.subr.bf16.mxu0 %v2127
        %2938 = vmatpush1.bf16.msra.mxu0 %v2126
        %2939 = vmatprep.subr.bf16.mxu0 %v2125
        %2940 = vmatpush1.bf16.msra.mxu0 %v2124
        %2941 = vmatprep.subr.bf16.mxu0 %v2123
        %2942 = vmatpush1.bf16.msra.mxu0 %v2122
        %2943 = vmatprep.subr.bf16.mxu0 %v2121
        %2944 = vmatpush1.bf16.msra.mxu0 %v2120
        %2945 = vmatprep.subr.bf16.mxu0 %v2119
        %2946 = vmatpush1.bf16.msra.mxu0 %v2118
        %2947 = vmatprep.subr.bf16.mxu0 %v2149
        %2948 = vmatpush2.bf16.msra.mxu0 %v2148
        %2949 = vmatprep.subr.bf16.mxu0 %v2147
        %2950 = vmatpush2.bf16.msra.mxu0 %v2146
        %2951 = vmatprep.subr.bf16.mxu0 %v2145
        %2952 = vmatpush2.bf16.msra.mxu0 %v2144
        %2953 = vmatprep.subr.bf16.mxu0 %v2143
        %2954 = vmatpush2.bf16.msra.mxu0 %v2142
        %2955 = vmatprep.subr.bf16.mxu0 %v2141
        %2956 = vmatpush2.bf16.msra.mxu0 %v2140
        %2957 = vmatprep.subr.bf16.mxu0 %v2139
        %2958 = vmatpush2.bf16.msra.mxu0 %v2138
        %2959 = vmatprep.subr.bf16.mxu0 %v2137
        %2960 = vmatpush2.bf16.msra.mxu0 %v2136
        %2961 = vmatprep.subr.bf16.mxu0 %v2135
        %2962 = vmatpush2.bf16.msra.mxu0 %v2134
        %2963 = vmatprep.mubr.bf16.mxu0 %v769
        %2964 = vmatmul.mubr.bf16.gmra.mxu0 %v768
        %v2965 = vpop.f32.mrf.mxu0
        %v2966 = vadd.f32 %v2925, %v2965
        %v2967 = vpop.f32.mrf.mxu0
        %v2968 = vadd.f32 %v2927, %v2967
        %v2969 = vpop.f32.mrf.mxu0
        %v2970 = vpop.f32.mrf.mxu0
        %2971 = vdwg.mxu0
        %2972 = vmatprep.subr.bf16.mxu0 %v2165
        %2973 = vmatpush1.bf16.msra.mxu0 %v2164
        %2974 = vmatprep.subr.bf16.mxu0 %v2163
        %2975 = vmatpush1.bf16.msra.mxu0 %v2162
        %2976 = vmatprep.subr.bf16.mxu0 %v2161
        %2977 = vmatpush1.bf16.msra.mxu0 %v2160
        %2978 = vmatprep.subr.bf16.mxu0 %v2159
        %2979 = vmatpush1.bf16.msra.mxu0 %v2158
        %2980 = vmatprep.subr.bf16.mxu0 %v2157
        %2981 = vmatpush1.bf16.msra.mxu0 %v2156
        %2982 = vmatprep.subr.bf16.mxu0 %v2155
        %2983 = vmatpush1.bf16.msra.mxu0 %v2154
        %2984 = vmatprep.subr.bf16.mxu0 %v2153
        %2985 = vmatpush1.bf16.msra.mxu0 %v2152
        %2986 = vmatprep.subr.bf16.mxu0 %v2151
        %2987 = vmatpush1.bf16.msra.mxu0 %v2150
        %2988 = vmatprep.subr.bf16.mxu0 %v2181
        %2989 = vmatpush2.bf16.msra.mxu0 %v2180
        %2990 = vmatprep.subr.bf16.mxu0 %v2179
        %2991 = vmatpush2.bf16.msra.mxu0 %v2178
        %2992 = vmatprep.subr.bf16.mxu0 %v2177
        %2993 = vmatpush2.bf16.msra.mxu0 %v2176
        %2994 = vmatprep.subr.bf16.mxu0 %v2175
        %2995 = vmatpush2.bf16.msra.mxu0 %v2174
        %2996 = vmatprep.subr.bf16.mxu0 %v2173
        %2997 = vmatpush2.bf16.msra.mxu0 %v2172
        %2998 = vmatprep.subr.bf16.mxu0 %v2171
        %2999 = vmatpush2.bf16.msra.mxu0 %v2170
        %3000 = vmatprep.subr.bf16.mxu0 %v2169
        %3001 = vmatpush2.bf16.msra.mxu0 %v2168
        %3002 = vmatprep.subr.bf16.mxu0 %v2167
        %3003 = vmatpush2.bf16.msra.mxu0 %v2166
        %3004 = vmatprep.mubr.bf16.mxu0 %v771
        %3005 = vmatmul.mubr.bf16.gmra.mxu0 %v770
        %v3006 = vpop.f32.mrf.mxu0
        %v3007 = vadd.f32 %v2966, %v3006
        %v3008 = vpop.f32.mrf.mxu0
        %v3009 = vadd.f32 %v2968, %v3008
        %v3010 = vpop.f32.mrf.mxu0
        %v3011 = vpop.f32.mrf.mxu0
        %3012 = vdwg.mxu0
        %3013 = vmatprep.subr.bf16.mxu0 %v2197
        %3014 = vmatpush1.bf16.msra.mxu0 %v2196
        %3015 = vmatprep.subr.bf16.mxu0 %v2195
        %3016 = vmatpush1.bf16.msra.mxu0 %v2194
        %3017 = vmatprep.subr.bf16.mxu0 %v2193
        %3018 = vmatpush1.bf16.msra.mxu0 %v2192
        %3019 = vmatprep.subr.bf16.mxu0 %v2191
        %3020 = vmatpush1.bf16.msra.mxu0 %v2190
        %3021 = vmatprep.subr.bf16.mxu0 %v2189
        %3022 = vmatpush1.bf16.msra.mxu0 %v2188
        %3023 = vmatprep.subr.bf16.mxu0 %v2187
        %3024 = vmatpush1.bf16.msra.mxu0 %v2186
        %3025 = vmatprep.subr.bf16.mxu0 %v2185
        %3026 = vmatpush1.bf16.msra.mxu0 %v2184
        %3027 = vmatprep.subr.bf16.mxu0 %v2183
        %3028 = vmatpush1.bf16.msra.mxu0 %v2182
        %3029 = vmatprep.subr.bf16.mxu0 %v2213
        %3030 = vmatpush2.bf16.msra.mxu0 %v2212
        %3031 = vmatprep.subr.bf16.mxu0 %v2211
        %3032 = vmatpush2.bf16.msra.mxu0 %v2210
        %3033 = vmatprep.subr.bf16.mxu0 %v2209
        %3034 = vmatpush2.bf16.msra.mxu0 %v2208
        %3035 = vmatprep.subr.bf16.mxu0 %v2207
        %3036 = vmatpush2.bf16.msra.mxu0 %v2206
        %3037 = vmatprep.subr.bf16.mxu0 %v2205
        %3038 = vmatpush2.bf16.msra.mxu0 %v2204
        %3039 = vmatprep.subr.bf16.mxu0 %v2203
        %3040 = vmatpush2.bf16.msra.mxu0 %v2202
        %3041 = vmatprep.subr.bf16.mxu0 %v2201
        %3042 = vmatpush2.bf16.msra.mxu0 %v2200
        %3043 = vmatprep.subr.bf16.mxu0 %v2199
        %3044 = vmatpush2.bf16.msra.mxu0 %v2198
        %3045 = vmatprep.mubr.bf16.mxu0 %v773
        %3046 = vmatmul.mubr.bf16.gmra.mxu0 %v772
        %v3047 = vpop.f32.mrf.mxu0
        %v3048 = vadd.f32 %v3007, %v3047
        %v3049 = vpop.f32.mrf.mxu0
        %v3050 = vadd.f32 %v3009, %v3049
        %v3051 = vpop.f32.mrf.mxu0
        %v3052 = vpop.f32.mrf.mxu0
        %3053 = vdwg.mxu0
        %3054 = vmatprep.subr.bf16.mxu0 %v2229
        %3055 = vmatpush1.bf16.msra.mxu0 %v2228
        %3056 = vmatprep.subr.bf16.mxu0 %v2227
        %3057 = vmatpush1.bf16.msra.mxu0 %v2226
        %3058 = vmatprep.subr.bf16.mxu0 %v2225
        %3059 = vmatpush1.bf16.msra.mxu0 %v2224
        %3060 = vmatprep.subr.bf16.mxu0 %v2223
        %3061 = vmatpush1.bf16.msra.mxu0 %v2222
        %3062 = vmatprep.subr.bf16.mxu0 %v2221
        %3063 = vmatpush1.bf16.msra.mxu0 %v2220
        %3064 = vmatprep.subr.bf16.mxu0 %v2219
        %3065 = vmatpush1.bf16.msra.mxu0 %v2218
        %3066 = vmatprep.subr.bf16.mxu0 %v2217
        %3067 = vmatpush1.bf16.msra.mxu0 %v2216
        %3068 = vmatprep.subr.bf16.mxu0 %v2215
        %3069 = vmatpush1.bf16.msra.mxu0 %v2214
        %3070 = vmatprep.subr.bf16.mxu0 %v2245
        %3071 = vmatpush2.bf16.msra.mxu0 %v2244
        %3072 = vmatprep.subr.bf16.mxu0 %v2243
        %3073 = vmatpush2.bf16.msra.mxu0 %v2242
        %3074 = vmatprep.subr.bf16.mxu0 %v2241
        %3075 = vmatpush2.bf16.msra.mxu0 %v2240
        %3076 = vmatprep.subr.bf16.mxu0 %v2239
        %3077 = vmatpush2.bf16.msra.mxu0 %v2238
        %3078 = vmatprep.subr.bf16.mxu0 %v2237
        %3079 = vmatpush2.bf16.msra.mxu0 %v2236
        %3080 = vmatprep.subr.bf16.mxu0 %v2235
        %3081 = vmatpush2.bf16.msra.mxu0 %v2234
        %3082 = vmatprep.subr.bf16.mxu0 %v2233
        %3083 = vmatpush2.bf16.msra.mxu0 %v2232
        %3084 = vmatprep.subr.bf16.mxu0 %v2231
        %3085 = vmatpush2.bf16.msra.mxu0 %v2230
        %3086 = vmatprep.mubr.bf16.mxu0 %v775
        %3087 = vmatmul.mubr.bf16.gmra.mxu0 %v774
        %v3088 = vpop.f32.mrf.mxu0
        %v3089 = vadd.f32 %v3048, %v3088
        %v3090 = vpop.f32.mrf.mxu0
        %v3091 = vadd.f32 %v3050, %v3090
        %v3092 = vpop.f32.mrf.mxu0
        %v3093 = vpop.f32.mrf.mxu0
        %3094 = vdwg.mxu0
        %3095 = vmatprep.subr.bf16.mxu0 %v2261
        %3096 = vmatpush1.bf16.msra.mxu0 %v2260
        %3097 = vmatprep.subr.bf16.mxu0 %v2259
        %3098 = vmatpush1.bf16.msra.mxu0 %v2258
        %3099 = vmatprep.subr.bf16.mxu0 %v2257
        %3100 = vmatpush1.bf16.msra.mxu0 %v2256
        %3101 = vmatprep.subr.bf16.mxu0 %v2255
        %3102 = vmatpush1.bf16.msra.mxu0 %v2254
        %3103 = vmatprep.subr.bf16.mxu0 %v2253
        %3104 = vmatpush1.bf16.msra.mxu0 %v2252
        %3105 = vmatprep.subr.bf16.mxu0 %v2251
        %3106 = vmatpush1.bf16.msra.mxu0 %v2250
        %3107 = vmatprep.subr.bf16.mxu0 %v2249
        %3108 = vmatpush1.bf16.msra.mxu0 %v2248
        %3109 = vmatprep.subr.bf16.mxu0 %v2247
        %3110 = vmatpush1.bf16.msra.mxu0 %v2246
        %3111 = vmatprep.subr.bf16.mxu0 %v2277
        %3112 = vmatpush2.bf16.msra.mxu0 %v2276
        %3113 = vmatprep.subr.bf16.mxu0 %v2275
        %3114 = vmatpush2.bf16.msra.mxu0 %v2274
        %3115 = vmatprep.subr.bf16.mxu0 %v2273
        %3116 = vmatpush2.bf16.msra.mxu0 %v2272
        %3117 = vmatprep.subr.bf16.mxu0 %v2271
        %3118 = vmatpush2.bf16.msra.mxu0 %v2270
        %3119 = vmatprep.subr.bf16.mxu0 %v2269
        %3120 = vmatpush2.bf16.msra.mxu0 %v2268
        %3121 = vmatprep.subr.bf16.mxu0 %v2267
        %3122 = vmatpush2.bf16.msra.mxu0 %v2266
        %3123 = vmatprep.subr.bf16.mxu0 %v2265
        %3124 = vmatpush2.bf16.msra.mxu0 %v2264
        %3125 = vmatprep.subr.bf16.mxu0 %v2263
        %3126 = vmatpush2.bf16.msra.mxu0 %v2262
        %3127 = vmatprep.mubr.bf16.mxu0 %v777
        %3128 = vmatmul.mubr.bf16.gmra.mxu0 %v776
        %v3129 = vpop.f32.mrf.mxu0
        %v3130 = vadd.f32 %v3089, %v3129
        %v3131 = vpop.f32.mrf.mxu0
        %v3132 = vadd.f32 %v3091, %v3131
        %v3133 = vpop.f32.mrf.mxu0
        %v3134 = vpop.f32.mrf.mxu0
        %3135 = vdwg.mxu0
        %3136 = vmatprep.subr.bf16.mxu0 %v2293
        %3137 = vmatpush1.bf16.msra.mxu0 %v2292
        %3138 = vmatprep.subr.bf16.mxu0 %v2291
        %3139 = vmatpush1.bf16.msra.mxu0 %v2290
        %3140 = vmatprep.subr.bf16.mxu0 %v2289
        %3141 = vmatpush1.bf16.msra.mxu0 %v2288
        %3142 = vmatprep.subr.bf16.mxu0 %v2287
        %3143 = vmatpush1.bf16.msra.mxu0 %v2286
        %3144 = vmatprep.subr.bf16.mxu0 %v2285
        %3145 = vmatpush1.bf16.msra.mxu0 %v2284
        %3146 = vmatprep.subr.bf16.mxu0 %v2283
        %3147 = vmatpush1.bf16.msra.mxu0 %v2282
        %3148 = vmatprep.subr.bf16.mxu0 %v2281
        %3149 = vmatpush1.bf16.msra.mxu0 %v2280
        %3150 = vmatprep.subr.bf16.mxu0 %v2279
        %3151 = vmatpush1.bf16.msra.mxu0 %v2278
        %3152 = vmatprep.subr.bf16.mxu0 %v2309
        %3153 = vmatpush2.bf16.msra.mxu0 %v2308
        %3154 = vmatprep.subr.bf16.mxu0 %v2307
        %3155 = vmatpush2.bf16.msra.mxu0 %v2306
        %3156 = vmatprep.subr.bf16.mxu0 %v2305
        %3157 = vmatpush2.bf16.msra.mxu0 %v2304
        %3158 = vmatprep.subr.bf16.mxu0 %v2303
        %3159 = vmatpush2.bf16.msra.mxu0 %v2302
        %3160 = vmatprep.subr.bf16.mxu0 %v2301
        %3161 = vmatpush2.bf16.msra.mxu0 %v2300
        %3162 = vmatprep.subr.bf16.mxu0 %v2299
        %3163 = vmatpush2.bf16.msra.mxu0 %v2298
        %3164 = vmatprep.subr.bf16.mxu0 %v2297
        %3165 = vmatpush2.bf16.msra.mxu0 %v2296
        %3166 = vmatprep.subr.bf16.mxu0 %v2295
        %3167 = vmatpush2.bf16.msra.mxu0 %v2294
        %3168 = vmatprep.mubr.bf16.mxu0 %v779
        %3169 = vmatmul.mubr.bf16.gmra.mxu0 %v778
        %v3170 = vpop.f32.mrf.mxu0
        %v3171 = vadd.f32 %v3130, %v3170
        %v3172 = vpop.f32.mrf.mxu0
        %v3173 = vadd.f32 %v3132, %v3172
        %v3174 = vpop.f32.mrf.mxu0
        %v3175 = vpop.f32.mrf.mxu0
        %3176 = vdwg.mxu0
        %3177 = vmatprep.subr.bf16.mxu0 %v2325
        %3178 = vmatpush1.bf16.msra.mxu0 %v2324
        %3179 = vmatprep.subr.bf16.mxu0 %v2323
        %3180 = vmatpush1.bf16.msra.mxu0 %v2322
        %3181 = vmatprep.subr.bf16.mxu0 %v2321
        %3182 = vmatpush1.bf16.msra.mxu0 %v2320
        %3183 = vmatprep.subr.bf16.mxu0 %v2319
        %3184 = vmatpush1.bf16.msra.mxu0 %v2318
        %3185 = vmatprep.subr.bf16.mxu0 %v2317
        %3186 = vmatpush1.bf16.msra.mxu0 %v2316
        %3187 = vmatprep.subr.bf16.mxu0 %v2315
        %3188 = vmatpush1.bf16.msra.mxu0 %v2314
        %3189 = vmatprep.subr.bf16.mxu0 %v2313
        %3190 = vmatpush1.bf16.msra.mxu0 %v2312
        %3191 = vmatprep.subr.bf16.mxu0 %v2311
        %3192 = vmatpush1.bf16.msra.mxu0 %v2310
        %3193 = vmatprep.subr.bf16.mxu0 %v2341
        %3194 = vmatpush2.bf16.msra.mxu0 %v2340
        %3195 = vmatprep.subr.bf16.mxu0 %v2339
        %3196 = vmatpush2.bf16.msra.mxu0 %v2338
        %3197 = vmatprep.subr.bf16.mxu0 %v2337
        %3198 = vmatpush2.bf16.msra.mxu0 %v2336
        %3199 = vmatprep.subr.bf16.mxu0 %v2335
        %3200 = vmatpush2.bf16.msra.mxu0 %v2334
        %3201 = vmatprep.subr.bf16.mxu0 %v2333
        %3202 = vmatpush2.bf16.msra.mxu0 %v2332
        %3203 = vmatprep.subr.bf16.mxu0 %v2331
        %3204 = vmatpush2.bf16.msra.mxu0 %v2330
        %3205 = vmatprep.subr.bf16.mxu0 %v2329
        %3206 = vmatpush2.bf16.msra.mxu0 %v2328
        %3207 = vmatprep.subr.bf16.mxu0 %v2327
        %3208 = vmatpush2.bf16.msra.mxu0 %v2326
        %3209 = vmatprep.mubr.bf16.mxu0 %v781
        %3210 = vmatmul.mubr.bf16.gmra.mxu0 %v780
        %v3211 = vpop.f32.mrf.mxu0
        %v3212 = vadd.f32 %v3171, %v3211
        %v3213 = vpop.f32.mrf.mxu0
        %v3214 = vadd.f32 %v3173, %v3213
        %v3215 = vpop.f32.mrf.mxu0
        %v3216 = vpop.f32.mrf.mxu0
        %3217 = vdwg.mxu0
        %v3218 = vadd.f32 %v324, %v3212
        %v3219 = vadd.f32 %v325, %v3214
        %3220 = vst [vmem:[#allocation2] sm:$0xff] %v3218
        %3221 = vst [vmem:[#allocation2 + $0x8] sm:$0xff] %v3219
        %p3222 = scmp.eq.s32.totalorder %s26, 3
        // Predicated region
        $region49: #{mlp_forward.1} parent=35 // pred_check
          %p3223 = pneg %p3222
        $region50: #{mlp_forward.1} parent=35 // pred_check_branch
          %3225 = sbr.rel (%p3223) target = $region52
        $region51: #{mlp_forward.1} parent=35 // pred_region
          %v3226 = vld [vmem:[#allocation2] sm:$0xff]
          %v3227 = vld [vmem:[#allocation2 + $0x8] sm:$0xff]
          %v3228 = vld [vmem:[%s260] sm:$0x3]
          %v3230 = vlaneseq
          %v3231 = vshrl.u32 %v3230, 7
          %v3232 = vsub.s32 0, %v3231
          %v3233 = vrot.slane %v3228, %v3232
          %v3234 = vlaneseq
          %v3235 = vshrl.u32 %v3234, 7
          %v3236 = vsub.s32 1, %v3235
          %v3237 = vrot.slane %v3228, %v3236
          %v3240 = vadd.f32 %v3226, %v3233
          %v3241 = vadd.f32 %v3227, %v3237
          %v3242 = vmax.f32 %v3240, 0.0
          %v3243 = vmax.f32 %v3241, 0.0
          %v3244 = vld [vmem:[%s312] sm:$0xff]
          %v3245 = vld [vmem:[%s312 + $0x8] sm:$0xff]
          %v3246 = vld [vmem:[%s312 + $0x10] sm:$0xff]
          %v3247 = vld [vmem:[%s312 + $0x18] sm:$0xff]
          %v3248 = vld [vmem:[%s312 + $0x20] sm:$0xff]
          %v3249 = vld [vmem:[%s312 + $0x28] sm:$0xff]
          %v3250 = vld [vmem:[%s312 + $0x30] sm:$0xff]
          %v3251 = vld [vmem:[%s312 + $0x38] sm:$0xff]
          %v3252 = vld [vmem:[%s312 + $0x40] sm:$0xff]
          %v3253 = vld [vmem:[%s312 + $0x48] sm:$0xff]
          %v3254 = vld [vmem:[%s312 + $0x50] sm:$0xff]
          %v3255 = vld [vmem:[%s312 + $0x58] sm:$0xff]
          %v3256 = vld [vmem:[%s312 + $0x60] sm:$0xff]
          %v3257 = vld [vmem:[%s312 + $0x68] sm:$0xff]
          %v3258 = vld [vmem:[%s312 + $0x70] sm:$0xff]
          %v3259 = vld [vmem:[%s312 + $0x78] sm:$0xff]
          %v3260 = vld [vmem:[%s312 + $0x80] sm:$0xff]
          %v3261 = vld [vmem:[%s312 + $0x88] sm:$0xff]
          %v3262 = vld [vmem:[%s312 + $0x90] sm:$0xff]
          %v3263 = vld [vmem:[%s312 + $0x98] sm:$0xff]
          %v3264 = vld [vmem:[%s312 + $0xa0] sm:$0xff]
          %v3265 = vld [vmem:[%s312 + $0xa8] sm:$0xff]
          %v3266 = vld [vmem:[%s312 + $0xb0] sm:$0xff]
          %v3267 = vld [vmem:[%s312 + $0xb8] sm:$0xff]
          %v3268 = vld [vmem:[%s312 + $0xc0] sm:$0xff]
          %v3269 = vld [vmem:[%s312 + $0xc8] sm:$0xff]
          %v3270 = vld [vmem:[%s312 + $0xd0] sm:$0xff]
          %v3271 = vld [vmem:[%s312 + $0xd8] sm:$0xff]
          %v3272 = vld [vmem:[%s312 + $0xe0] sm:$0xff]
          %v3273 = vld [vmem:[%s312 + $0xe8] sm:$0xff]
          %v3274 = vld [vmem:[%s312 + $0xf0] sm:$0xff]
          %v3275 = vld [vmem:[%s312 + $0xf8] sm:$0xff]
          %3276 = vmatprep.subr.mxu0 0.0
          %3277 = vmatpush1.msra.mxu0 %v3259
          %3278 = vmatprep.subr.mxu0 0.0
          %3279 = vmatpush1.msra.mxu0 %v3258
          %3280 = vmatprep.subr.mxu0 0.0
          %3281 = vmatpush1.msra.mxu0 %v3257
          %3282 = vmatprep.subr.mxu0 0.0
          %3283 = vmatpush1.msra.mxu0 %v3256
          %3284 = vmatprep.subr.mxu0 0.0
          %3285 = vmatpush1.msra.mxu0 %v3255
          %3286 = vmatprep.subr.mxu0 0.0
          %3287 = vmatpush1.msra.mxu0 %v3254
          %3288 = vmatprep.subr.mxu0 0.0
          %3289 = vmatpush1.msra.mxu0 %v3253
          %3290 = vmatprep.subr.mxu0 0.0
          %3291 = vmatpush1.msra.mxu0 %v3252
          %3292 = vmatprep.subr.mxu0 0.0
          %3293 = vmatpush1.msra.mxu0 %v3251
          %3294 = vmatprep.subr.mxu0 0.0
          %3295 = vmatpush1.msra.mxu0 %v3250
          %3296 = vmatprep.subr.mxu0 0.0
          %3297 = vmatpush1.msra.mxu0 %v3249
          %3298 = vmatprep.subr.mxu0 0.0
          %3299 = vmatpush1.msra.mxu0 %v3248
          %3300 = vmatprep.subr.mxu0 0.0
          %3301 = vmatpush1.msra.mxu0 %v3247
          %3302 = vmatprep.subr.mxu0 0.0
          %3303 = vmatpush1.msra.mxu0 %v3246
          %3304 = vmatprep.subr.mxu0 0.0
          %3305 = vmatpush1.msra.mxu0 %v3245
          %3306 = vmatprep.subr.mxu0 0.0
          %3307 = vmatpush1.msra.mxu0 %v3244
          %3308 = vmatprep.subr.mxu0 0.0
          %3309 = vmatpush2.msra.mxu0 %v3275
          %3310 = vmatprep.subr.mxu0 0.0
          %3311 = vmatpush2.msra.mxu0 %v3274
          %3312 = vmatprep.subr.mxu0 0.0
          %3313 = vmatpush2.msra.mxu0 %v3273
          %3314 = vmatprep.subr.mxu0 0.0
          %3315 = vmatpush2.msra.mxu0 %v3272
          %3316 = vmatprep.subr.mxu0 0.0
          %3317 = vmatpush2.msra.mxu0 %v3271
          %3318 = vmatprep.subr.mxu0 0.0
          %3319 = vmatpush2.msra.mxu0 %v3270
          %3320 = vmatprep.subr.mxu0 0.0
          %3321 = vmatpush2.msra.mxu0 %v3269
          %3322 = vmatprep.subr.mxu0 0.0
          %3323 = vmatpush2.msra.mxu0 %v3268
          %3324 = vmatprep.subr.mxu0 0.0
          %3325 = vmatpush2.msra.mxu0 %v3267
          %3326 = vmatprep.subr.mxu0 0.0
          %3327 = vmatpush2.msra.mxu0 %v3266
          %3328 = vmatprep.subr.mxu0 0.0
          %3329 = vmatpush2.msra.mxu0 %v3265
          %3330 = vmatprep.subr.mxu0 0.0
          %3331 = vmatpush2.msra.mxu0 %v3264
          %3332 = vmatprep.subr.mxu0 0.0
          %3333 = vmatpush2.msra.mxu0 %v3263
          %3334 = vmatprep.subr.mxu0 0.0
          %3335 = vmatpush2.msra.mxu0 %v3262
          %3336 = vmatprep.subr.mxu0 0.0
          %3337 = vmatpush2.msra.mxu0 %v3261
          %3338 = vmatprep.subr.mxu0 0.0
          %3339 = vmatpush2.msra.mxu0 %v3260
          %3340 = vmatprep.mubr.f32.mxu0 %v3243
          %3341 = vmatmul.mubr.f32.gmra.mxu0 %v3242
          %v3342 = vpop.f32.mrf.mxu0
          %v3343 = vadd.f32 0.0, %v3342
          %v3344 = vpop.f32.mrf.mxu0
          %3345 = vdwg.mxu0
          %vm3346 = vcmask 15360
          %3347 = vst.msk [vmem:[%s317] sm:$0xff] %vm3346, %v3343
        $region52: #{mlp_forward.1} parent=35 // pred_fallthru
          _
        %p3348 = scmp.lt.s32.totalorder %s25, 1
        %s3349 = scalar_select %p3348, %s25, 1
        %s3350 = smul.addr %s3349, 8
        %s3351 = scalar_lea.vmem %s4, %s3350
        // Predicated region
        $region53: #{mlp_forward.1} parent=35 // pred_check
          %p3352 = pneg %p157
        $region54: #{mlp_forward.1} parent=35 // pred_check_branch
          %3354 = sbr.rel (%p3352) target = $region56
        $region55: #{mlp_forward.1} parent=35 // pred_region
          _
        $region56: #{mlp_forward.1} parent=35 // pred_fallthru
          _
      $region36: #{mlp_forward.1} parent=5 // pred_fallthru
        _
      %p3355 = scmp.le.s32.totalorder 2, %s16
      // Predicated region
      $region57: #{mlp_forward.1} parent=5 // pred_check
        %p3356 = pneg %p3355
      $region58: #{mlp_forward.1} parent=5 // pred_check_branch
        %3358 = sbr.rel (%p3356) target = $region60
      $region59: #{mlp_forward.1} parent=5 // pred_region
        %s3359 = ssub.s32 %s16, 2
        // Predicated region
        $region61: #{mlp_forward.1} parent=59 // pred_check
          %p3360 = pneg %p163
        $region62: #{mlp_forward.1} parent=59 // pred_check_branch
          %3362 = sbr.rel (%p3360) target = $region64
        $region63: #{mlp_forward.1} parent=59 // pred_region
          %p3363 = scmp.lt.s32.totalorder %s27, 1
          %s3364 = scalar_select %p3363, %s27, 1
          %s3365 = smul.addr %s3364, 8
          %s3366 = scalar_lea.vmem %s4, %s3365
        $region64: #{mlp_forward.1} parent=59 // pred_fallthru
          _
      $region60: #{mlp_forward.1} parent=5 // pred_fallthru
        _
    $region6: #{mlp_forward.1} parent=1 // loop_footer
      %s20 = sadd.s32 1, %s16
    $region7: #{mlp_forward.1} parent=1 // loop_footer_branch
      %15 = sbr.rel target = $region3
    $region8: #{mlp_forward.1} parent=1 // loop_exit
      _
    %3367 = vsyncpa [#allocation4], 1
    %s3368 = scalar_lea.sflag [#allocation4], 1
    %3369 = vsyncpa %s3368, 1
    %3370 = vsyncpa [#allocation6], 1
    %s3371 = scalar_lea.sflag [#allocation6], 1
    %3372 = vsyncpa %s3371, 1

</llo_original>
